<compile_context>
chip_gen: v7x
topology: tpu7x:2x2x1
jax: 0.10.0
libtpu: 0.0.40
codegen_flags: <defaults>
</compile_context>

<pallas_src>
import functools

import jax
import jax.numpy as jnp
from jax import lax
from jax.experimental import pallas as pl
from jax.experimental.pallas import tpu as pltpu

_B16 = jnp.bfloat16
_VMEM_LIMIT = 32 * 1024 * 1024  # conservative scoped-VMEM budget (fits v5e/v6e/v7x)


# ----------------------------------------------------------------------------
# Fused map-agent-aware attention + out-proj + residual + LayerNorm kernel
# ----------------------------------------------------------------------------
def _maa_attn_fused_kernel(q_ref, kv_ref, map_ref, so_ref,
                           wq_ref, wkv_ref, wmap_ref,
                           wout_ref, bout_ref, g_ref, beta_ref,
                           out_ref, attn_ref, *, num_heads):
    # One batch element per grid step.
    D = q_ref.shape[2]
    H = num_heads
    dh = D // H

    q_res = q_ref[0]                         # (Lq, D) f32 residual (q == residual)
    q = q_res.astype(_B16)
    kv = kv_ref[0].astype(_B16)              # (Lk, D)  k == v tensor
    mp = map_ref[0].astype(_B16)             # (Lk, D)  k_map == v_map tensor
    so = so_ref[0]                           # (Lq, Lk) f32 self/other mask

    # Fused projections (bf16 x bf16 -> f32 accumulate). 1/sqrt(dh) is already
    # folded into wq ([self|other|map]). All projection biases disabled.
    qp = jnp.dot(q, wq_ref[...], preferred_element_type=jnp.float32)     # (Lq, 3D)
    kvp = jnp.dot(kv, wkv_ref[...], preferred_element_type=jnp.float32)  # (Lk, 3D) [k_self|k_other|v]
    mpp = jnp.dot(mp, wmap_ref[...], preferred_element_type=jnp.float32) # (Lk, 2D) [k_map|v_map]

    qp16 = qp.astype(_B16)
    kvp16 = kvp.astype(_B16)
    mpp16 = mpp.astype(_B16)

    dn = (((1,), (1,)), ((), ()))            # (Lq,dh) x (Lk,dh) -> (Lq,Lk)
    head_outs = []
    for h in range(H):                       # static unroll over heads
        a0, a1 = h * dh, (h + 1) * dh
        qs_h = qp16[:, a0:a1]
        qo_h = qp16[:, D + a0:D + a1]
        qm_h = qp16[:, 2 * D + a0:2 * D + a1]
        ks_h = kvp16[:, a0:a1]
        ko_h = kvp16[:, D + a0:D + a1]
        v_h = kvp16[:, 2 * D + a0:2 * D + a1]
        km_h = mpp16[:, a0:a1]
        vm_h = mpp16[:, D + a0:D + a1]

        s_self = lax.dot_general(qs_h, ks_h, dn, preferred_element_type=jnp.float32)
        s_other = lax.dot_general(qo_h, ko_h, dn, preferred_element_type=jnp.float32)
        s_map = lax.dot_general(qm_h, km_h, dn, preferred_element_type=jnp.float32)
        s_agent = jnp.where(so > 0.5, s_self, s_other)

        # joint softmax over [agent keys | map keys] (f32 math)
        m = jnp.maximum(jnp.max(s_agent, axis=-1, keepdims=True),
                        jnp.max(s_map, axis=-1, keepdims=True))
        ea = jnp.exp(s_agent - m)
        em = jnp.exp(s_map - m)
        inv = pl.reciprocal(jnp.sum(ea, axis=-1, keepdims=True)
                            + jnp.sum(em, axis=-1, keepdims=True), approx=True)
        attn_ref[0, h] = jnp.concatenate([ea, em], axis=-1) * inv  # (Lq, 2*Lk)

        # PV matmul over agent values + map values, normalized afterwards in f32
        pv = (jnp.dot(ea.astype(_B16), v_h, preferred_element_type=jnp.float32)
              + jnp.dot(em.astype(_B16), vm_h, preferred_element_type=jnp.float32))
        head_outs.append(pv * inv)

    attn_out = jnp.concatenate(head_outs, axis=-1)                 # (Lq, D)

    # output projection (bias_out=True) + residual + LayerNorm epilogue
    proj = jnp.dot(attn_out.astype(_B16), wout_ref[...],
                   preferred_element_type=jnp.float32) + bout_ref[...]
    y = proj + q_res
    mu = jnp.mean(y, axis=-1, keepdims=True)
    var = jnp.mean(jnp.square(y - mu), axis=-1, keepdims=True)
    out_ref[0] = (y - mu) * lax.rsqrt(var + 1e-5) * g_ref[...] + beta_ref[...]


def attention_block(ap, ln_g, ln_b, q, kv, so_mask, kv_map):
    # q also serves as the residual input for the fused add+LayerNorm epilogue.
    # kv is the shared key/value tensor; kv_map the shared map key/value tensor
    # (the decoder layer always passes k == v and k_map == v_map).
    B, Lq, D = q.shape
    Lk = kv.shape[1]
    H = ap["num_heads"]

    seq_q = pl.BlockSpec((1, Lq, D), lambda b: (b, 0, 0))
    seq_k = pl.BlockSpec((1, Lk, D), lambda b: (b, 0, 0))
    mask_s = pl.BlockSpec((1, Lq, Lk), lambda b: (b, 0, 0))
    w2 = lambda shape: pl.BlockSpec(shape, lambda b: (0, 0))

    out, attn_w = pl.pallas_call(
        functools.partial(_maa_attn_fused_kernel, num_heads=H),
        grid=(B,),
        in_specs=[
            seq_q, seq_k, seq_k, mask_s,
            w2((D, 3 * D)), w2((D, 3 * D)), w2((D, 2 * D)),
            w2((D, D)), w2((1, D)), w2((1, D)), w2((1, D)),
        ],
        out_specs=(pl.BlockSpec((1, Lq, D), lambda b: (b, 0, 0)),
                   pl.BlockSpec((1, H, Lq, 2 * Lk), lambda b: (b, 0, 0, 0))),
        out_shape=(jax.ShapeDtypeStruct((B, Lq, D), jnp.float32),
                   jax.ShapeDtypeStruct((B, H, Lq, 2 * Lk), jnp.float32)),
        compiler_params=pltpu.CompilerParams(
            dimension_semantics=("parallel",),
            vmem_limit_bytes=_VMEM_LIMIT),
    )(q, kv, kv_map, so_mask.astype(jnp.float32),
      ap["wq_cat"], ap["wkv_cat"], ap["wmap_cat"],
      ap["wout"], ap["bout"], ln_g, ln_b)
    return out, attn_w


# ----------------------------------------------------------------------------
# Fused FFN (linear1 -> relu -> linear2) + residual + LayerNorm kernel
# ----------------------------------------------------------------------------
def _ffn_ln_kernel(x_ref, w1_ref, b1_ref, w2_ref, b2_ref, g_ref, beta_ref, o_ref):
    x = x_ref[...]                                                   # (tm, D) f32
    h = jnp.dot(x.astype(_B16), w1_ref[...],
                preferred_element_type=jnp.float32) + b1_ref[...]
    h = jnp.maximum(h, 0.0)
    y = jnp.dot(h.astype(_B16), w2_ref[...],
                preferred_element_type=jnp.float32) + b2_ref[...]
    y = y + x
    mu = jnp.mean(y, axis=-1, keepdims=True)
    var = jnp.mean(jnp.square(y - mu), axis=-1, keepdims=True)
    o_ref[...] = (y - mu) * lax.rsqrt(var + 1e-5) * g_ref[...] + beta_ref[...]


def _pick_tile_m(M):
    for t in (512, 256, 128):
        if M > t and M % t == 0:
            return t
    return M


def ffn_block(params, x):
    B, L, D = x.shape
    M = B * L
    F = params["W1"].shape[1]
    tm = _pick_tile_m(M)
    w2 = lambda shape: pl.BlockSpec(shape, lambda i: (0, 0))
    out = pl.pallas_call(
        _ffn_ln_kernel,
        grid=(M // tm,),
        in_specs=[pl.BlockSpec((tm, D), lambda i: (i, 0)),
                  w2((D, F)), w2((1, F)), w2((F, D)), w2((1, D)),
                  w2((1, D)), w2((1, D))],
        out_specs=pl.BlockSpec((tm, D), lambda i: (i, 0)),
        out_shape=jax.ShapeDtypeStruct((M, D), jnp.float32),
        compiler_params=pltpu.CompilerParams(
            dimension_semantics=("parallel",),
            vmem_limit_bytes=_VMEM_LIMIT),
    )(x.reshape(M, D), params["W1"], params["b1"], params["W2"], params["b2"],
      params["ln3_g"], params["ln3_b"])
    return out.reshape(B, L, D)


# ----------------------------------------------------------------------------
# Decoder layer forward
# ----------------------------------------------------------------------------
def decoder_layer_forward(params, tgt, memory, tgt_tgt_self_other_mask,
                          tgt_mem_self_other_mask, tgt_map, mem_map):
    # TODO(synk): optional additive attention masks (tgt_mask / memory_mask) are
    #             not implemented; the reference call in this layer passes None.
    # All dropout layers are identity (eval mode).
    tgt, self_w = attention_block(
        params["self_attn"], params["ln1_g"], params["ln1_b"],
        tgt, tgt, tgt_tgt_self_other_mask, tgt_map)

    tgt, cross_w = attention_block(
        params["cross_attn"], params["ln2_g"], params["ln2_b"],
        tgt, memory, tgt_mem_self_other_mask, mem_map)

    tgt = ffn_block(params, tgt)
    return tgt, tgt_map, self_w, cross_w


# ----------------------------------------------------------------------------
# Deterministic parameter init (fused weights pre-built at init time, bf16)
# ----------------------------------------------------------------------------
def init_attention_params(key, d_model, n_head):
    ks = jax.random.split(key, 10)
    s = 1.0 / jnp.sqrt(jnp.float32(d_model))

    def w(k):
        return jax.random.normal(k, (d_model, d_model), jnp.float32) * s

    wq_self, wq_other, wq_map = w(ks[0]), w(ks[1]), w(ks[2])
    wk_self, wk_other, wk_map = w(ks[3]), w(ks[4]), w(ks[5])
    wv_map, wv, wout = w(ks[6]), w(ks[7]), w(ks[8])
    dh = d_model // n_head
    scale = 1.0 / float(dh) ** 0.5
    return dict(
        num_heads=n_head,
        # fused q projection (self|other|map) with 1/sqrt(dh) folded in
        wq_cat=(jnp.concatenate([wq_self, wq_other, wq_map], axis=1) * scale).astype(_B16),
        # fused k/v projection (k_self|k_other|v) applied to the shared k==v tensor
        wkv_cat=jnp.concatenate([wk_self, wk_other, wv], axis=1).astype(_B16),
        # fused map projection (k_map|v_map) applied to the shared map tensor
        wmap_cat=jnp.concatenate([wk_map, wv_map], axis=1).astype(_B16),
        wout=wout.astype(_B16),
        bout=jax.random.normal(ks[9], (1, d_model), jnp.float32) * 0.02,  # bias_out=True
    )


def init_decoder_params(key, d_model, n_head, dim_ff):
    k_self, k_cross, k1, k2, k3, k4 = jax.random.split(key, 6)
    s1 = 1.0 / jnp.sqrt(jnp.float32(d_model))
    s2 = 1.0 / jnp.sqrt(jnp.float32(dim_ff))
    return dict(
        self_attn=init_attention_params(k_self, d_model, n_head),
        cross_attn=init_attention_params(k_cross, d_model, n_head),
        W1=(jax.random.normal(k1, (d_model, dim_ff), jnp.float32) * s1).astype(_B16),
        b1=jax.random.normal(k2, (1, dim_ff), jnp.float32) * 0.02,
        W2=(jax.random.normal(k3, (dim_ff, d_model), jnp.float32) * s2).astype(_B16),
        b2=jax.random.normal(k4, (1, d_model), jnp.float32) * 0.02,
        ln1_g=jnp.ones((1, d_model), jnp.float32), ln1_b=jnp.zeros((1, d_model), jnp.float32),
        ln2_g=jnp.ones((1, d_model), jnp.float32), ln2_b=jnp.zeros((1, d_model), jnp.float32),
        ln3_g=jnp.ones((1, d_model), jnp.float32), ln3_b=jnp.zeros((1, d_model), jnp.float32),
    )


# ----------------------------------------------------------------------------
if __name__ == "__main__":
    B, L_TGT, L_MEM, D_MODEL, N_HEAD, DIM_FF = 2, 8, 8, 32, 4, 64

    root = jax.random.PRNGKey(0)
    kp, kt, km_, ktm, kmm = jax.random.split(root, 5)

    params = init_decoder_params(kp, D_MODEL, N_HEAD, DIM_FF)

    tgt = jax.random.normal(kt, (B, L_TGT, D_MODEL), jnp.float32)
    memory = jax.random.normal(km_, (B, L_MEM, D_MODEL), jnp.float32)
    tgt_map = jax.random.normal(ktm, (B, L_TGT, D_MODEL), jnp.float32)
    mem_map = jax.random.normal(kmm, (B, L_MEM, D_MODEL), jnp.float32)

    # self/other masks: 1.0 where query and key belong to the same agent
    n_agents = 4
    agents_t = jnp.arange(L_TGT) % n_agents
    agents_m = jnp.arange(L_MEM) % n_agents
    tgt_tgt_mask = jnp.broadcast_to(
        (agents_t[:, None] == agents_t[None, :]).astype(jnp.float32), (B, L_TGT, L_TGT))
    tgt_mem_mask = jnp.broadcast_to(
        (agents_t[:, None] == agents_m[None, :]).astype(jnp.float32), (B, L_TGT, L_MEM))

    out, out_map, self_w, cross_w = decoder_layer_forward(
        params, tgt, memory, tgt_tgt_mask, tgt_mem_mask, tgt_map, mem_map)

    jax.block_until_ready((out, out_map, self_w, cross_w))

    assert out.shape == (B, L_TGT, D_MODEL)
    assert out_map.shape == (B, L_TGT, D_MODEL)
    assert self_w.shape == (B, N_HEAD, L_TGT, 2 * L_TGT)
    assert cross_w.shape == (B, N_HEAD, L_TGT, 2 * L_MEM)
    assert bool(jnp.all(jnp.isfinite(out)))
    assert bool(jnp.all(jnp.isfinite(self_w)))
    assert bool(jnp.all(jnp.isfinite(cross_w)))
    print("KERNEL_OK")
</pallas_src>

<mosaic_0001>
module attributes {stable_mosaic.version = 11 : i64} {
  func.func @_maa_attn_fused_kernel(%arg0: i32, %arg1: memref<1x8x32xf32, #tpu.memory_space<vmem>>, %arg2: memref<1x8x32xf32, #tpu.memory_space<vmem>>, %arg3: memref<1x8x32xf32, #tpu.memory_space<vmem>>, %arg4: memref<1x8x8xf32, #tpu.memory_space<vmem>>, %arg5: memref<32x96xbf16, #tpu.memory_space<vmem>>, %arg6: memref<32x96xbf16, #tpu.memory_space<vmem>>, %arg7: memref<32x64xbf16, #tpu.memory_space<vmem>>, %arg8: memref<32x32xbf16, #tpu.memory_space<vmem>>, %arg9: memref<1x32xf32, #tpu.memory_space<vmem>>, %arg10: memref<1x32xf32, #tpu.memory_space<vmem>>, %arg11: memref<1x32xf32, #tpu.memory_space<vmem>>, %arg12: memref<1x8x32xf32, #tpu.memory_space<vmem>>, %arg13: memref<1x4x8x16xf32, #tpu.memory_space<vmem>>) attributes {dimension_semantics = [#tpu.dimension_semantics<parallel>], iteration_bounds = array<i64: 2>, scalar_prefetch = 0 : i64, scratch_operands = 0 : i64, tpu.core_type = #tpu.core_type<tc>, window_params = [{transform_indices = @transform_0, window_bounds = array<i64: 1, 8, 32>}, {transform_indices = @transform_1, window_bounds = array<i64: 1, 8, 32>}, {transform_indices = @transform_2, window_bounds = array<i64: 1, 8, 32>}, {transform_indices = @transform_3, window_bounds = array<i64: 1, 8, 8>}, {pipeline_mode = #tpu.pipeline_mode<synchronous>, transform_indices = @transform_4, window_bounds = array<i64: 32, 96>}, {pipeline_mode = #tpu.pipeline_mode<synchronous>, transform_indices = @transform_5, window_bounds = array<i64: 32, 96>}, {pipeline_mode = #tpu.pipeline_mode<synchronous>, transform_indices = @transform_6, window_bounds = array<i64: 32, 64>}, {pipeline_mode = #tpu.pipeline_mode<synchronous>, transform_indices = @transform_7, window_bounds = array<i64: 32, 32>}, {pipeline_mode = #tpu.pipeline_mode<synchronous>, transform_indices = @transform_8, window_bounds = array<i64: 1, 32>}, {pipeline_mode = #tpu.pipeline_mode<synchronous>, transform_indices = @transform_9, window_bounds = array<i64: 1, 32>}, {pipeline_mode = #tpu.pipeline_mode<synchronous>, transform_indices = @transform_10, window_bounds = array<i64: 1, 32>}, {transform_indices = @transform_11, window_bounds = array<i64: 1, 8, 32>}, {transform_indices = @transform_12, window_bounds = array<i64: 1, 4, 8, 16>}]} {
    %c0 = arith.constant 0 : index
    %c0_0 = arith.constant 0 : index
    %c0_1 = arith.constant 0 : index
    %0 = vector.load %arg1[%c0, %c0_0, %c0_1] : memref<1x8x32xf32, #tpu.memory_space<vmem>>, vector<1x8x32xf32>
    %1 = vector.shape_cast %0 : vector<1x8x32xf32> to vector<8x32xf32>
    %2 = arith.truncf %1 : vector<8x32xf32> to vector<8x32xbf16>
    %c0_2 = arith.constant 0 : index
    %c0_3 = arith.constant 0 : index
    %c0_4 = arith.constant 0 : index
    %3 = vector.load %arg2[%c0_2, %c0_3, %c0_4] : memref<1x8x32xf32, #tpu.memory_space<vmem>>, vector<1x8x32xf32>
    %4 = vector.shape_cast %3 : vector<1x8x32xf32> to vector<8x32xf32>
    %5 = arith.truncf %4 : vector<8x32xf32> to vector<8x32xbf16>
    %c0_5 = arith.constant 0 : index
    %c0_6 = arith.constant 0 : index
    %c0_7 = arith.constant 0 : index
    %6 = vector.load %arg3[%c0_5, %c0_6, %c0_7] : memref<1x8x32xf32, #tpu.memory_space<vmem>>, vector<1x8x32xf32>
    %7 = vector.shape_cast %6 : vector<1x8x32xf32> to vector<8x32xf32>
    %8 = arith.truncf %7 : vector<8x32xf32> to vector<8x32xbf16>
    %c0_8 = arith.constant 0 : index
    %c0_9 = arith.constant 0 : index
    %c0_10 = arith.constant 0 : index
    %9 = vector.load %arg4[%c0_8, %c0_9, %c0_10] : memref<1x8x8xf32, #tpu.memory_space<vmem>>, vector<1x8x8xf32>
    %10 = vector.shape_cast %9 : vector<1x8x8xf32> to vector<8x8xf32>
    %c0_11 = arith.constant 0 : index
    %c0_12 = arith.constant 0 : index
    %11 = vector.load %arg5[%c0_11, %c0_12] : memref<32x96xbf16, #tpu.memory_space<vmem>>, vector<32x96xbf16>
    %cst = arith.constant dense<0.000000e+00> : vector<8x96xf32>
    %12 = tpu.matmul %2, %11, %cst {dimension_numbers = #tpu.dot_dimension_numbers<[1], [0], [0], [1], [0, 0, 1, 1], [], []>} : vector<8x32xbf16>, vector<32x96xbf16>, vector<8x96xf32> -> vector<8x96xf32>
    %c0_13 = arith.constant 0 : index
    %c0_14 = arith.constant 0 : index
    %13 = vector.load %arg6[%c0_13, %c0_14] : memref<32x96xbf16, #tpu.memory_space<vmem>>, vector<32x96xbf16>
    %cst_15 = arith.constant dense<0.000000e+00> : vector<8x96xf32>
    %14 = tpu.matmul %5, %13, %cst_15 {dimension_numbers = #tpu.dot_dimension_numbers<[1], [0], [0], [1], [0, 0, 1, 1], [], []>} : vector<8x32xbf16>, vector<32x96xbf16>, vector<8x96xf32> -> vector<8x96xf32>
    %c0_16 = arith.constant 0 : index
    %c0_17 = arith.constant 0 : index
    %15 = vector.load %arg7[%c0_16, %c0_17] : memref<32x64xbf16, #tpu.memory_space<vmem>>, vector<32x64xbf16>
    %cst_18 = arith.constant dense<0.000000e+00> : vector<8x64xf32>
    %16 = tpu.matmul %8, %15, %cst_18 {dimension_numbers = #tpu.dot_dimension_numbers<[1], [0], [0], [1], [0, 0, 1, 1], [], []>} : vector<8x32xbf16>, vector<32x64xbf16>, vector<8x64xf32> -> vector<8x64xf32>
    %17 = arith.truncf %12 : vector<8x96xf32> to vector<8x96xbf16>
    %18 = arith.truncf %14 : vector<8x96xf32> to vector<8x96xbf16>
    %19 = arith.truncf %16 : vector<8x64xf32> to vector<8x64xbf16>
    %20 = vector.extract_strided_slice %17 {offsets = [0, 0], sizes = [8, 8], strides = [1, 1]} : vector<8x96xbf16> to vector<8x8xbf16>
    %21 = vector.extract_strided_slice %17 {offsets = [0, 32], sizes = [8, 8], strides = [1, 1]} : vector<8x96xbf16> to vector<8x8xbf16>
    %22 = vector.extract_strided_slice %17 {offsets = [0, 64], sizes = [8, 8], strides = [1, 1]} : vector<8x96xbf16> to vector<8x8xbf16>
    %23 = vector.extract_strided_slice %18 {offsets = [0, 0], sizes = [8, 8], strides = [1, 1]} : vector<8x96xbf16> to vector<8x8xbf16>
    %24 = vector.extract_strided_slice %18 {offsets = [0, 32], sizes = [8, 8], strides = [1, 1]} : vector<8x96xbf16> to vector<8x8xbf16>
    %25 = vector.extract_strided_slice %18 {offsets = [0, 64], sizes = [8, 8], strides = [1, 1]} : vector<8x96xbf16> to vector<8x8xbf16>
    %26 = vector.extract_strided_slice %19 {offsets = [0, 0], sizes = [8, 8], strides = [1, 1]} : vector<8x64xbf16> to vector<8x8xbf16>
    %27 = vector.extract_strided_slice %19 {offsets = [0, 32], sizes = [8, 8], strides = [1, 1]} : vector<8x64xbf16> to vector<8x8xbf16>
    %cst_19 = arith.constant dense<0.000000e+00> : vector<8x8xf32>
    %28 = tpu.matmul %20, %23, %cst_19 {dimension_numbers = #tpu.dot_dimension_numbers<[1], [1], [0], [0], [0, 0, 1, 0], [], []>} : vector<8x8xbf16>, vector<8x8xbf16>, vector<8x8xf32> -> vector<8x8xf32>
    %cst_20 = arith.constant dense<0.000000e+00> : vector<8x8xf32>
    %29 = tpu.matmul %21, %24, %cst_20 {dimension_numbers = #tpu.dot_dimension_numbers<[1], [1], [0], [0], [0, 0, 1, 0], [], []>} : vector<8x8xbf16>, vector<8x8xbf16>, vector<8x8xf32> -> vector<8x8xf32>
    %cst_21 = arith.constant dense<0.000000e+00> : vector<8x8xf32>
    %30 = tpu.matmul %22, %26, %cst_21 {dimension_numbers = #tpu.dot_dimension_numbers<[1], [1], [0], [0], [0, 0, 1, 0], [], []>} : vector<8x8xbf16>, vector<8x8xbf16>, vector<8x8xf32> -> vector<8x8xf32>
    %cst_22 = arith.constant 5.000000e-01 : f32
    %31 = vector.broadcast %cst_22 : f32 to vector<8x8xf32>
    %32 = arith.cmpf ogt, %10, %31 : vector<8x8xf32>
    %33 = arith.select %32, %28, %29 : vector<8x8xi1>, vector<8x8xf32>
    %cst_23 = arith.constant dense<0xFF800000> : vector<8xf32>
    %34 = vector.multi_reduction <maximumf>, %33, %cst_23 [1] : vector<8x8xf32> to vector<8xf32>
    %35 = vector.shape_cast %34 : vector<8xf32> to vector<8x1xf32>
    %cst_24 = arith.constant dense<0xFF800000> : vector<8xf32>
    %36 = vector.multi_reduction <maximumf>, %30, %cst_24 [1] : vector<8x8xf32> to vector<8xf32>
    %37 = vector.shape_cast %36 : vector<8xf32> to vector<8x1xf32>
    %38 = arith.maximumf %35, %37 : vector<8x1xf32>
    %39 = vector.broadcast %38 : vector<8x1xf32> to vector<8x8xf32>
    %40 = arith.subf %33, %39 : vector<8x8xf32>
    %41 = math.exp %40 : vector<8x8xf32>
    %42 = vector.broadcast %38 : vector<8x1xf32> to vector<8x8xf32>
    %43 = arith.subf %30, %42 : vector<8x8xf32>
    %44 = math.exp %43 : vector<8x8xf32>
    %cst_25 = arith.constant dense<0.000000e+00> : vector<8xf32>
    %45 = vector.multi_reduction <add>, %41, %cst_25 [1] : vector<8x8xf32> to vector<8xf32>
    %46 = vector.shape_cast %45 : vector<8xf32> to vector<8x1xf32>
    %cst_26 = arith.constant dense<0.000000e+00> : vector<8xf32>
    %47 = vector.multi_reduction <add>, %44, %cst_26 [1] : vector<8x8xf32> to vector<8xf32>
    %48 = vector.shape_cast %47 : vector<8xf32> to vector<8x1xf32>
    %49 = arith.addf %46, %48 : vector<8x1xf32>
    %50 = tpu.reciprocal %49 {approx = true} : vector<8x1xf32> -> vector<8x1xf32>
    %51 = tpu.concatenate %41, %44 in 1 : vector<8x8xf32>, vector<8x8xf32> -> vector<8x16xf32>
    %52 = vector.broadcast %50 : vector<8x1xf32> to vector<8x16xf32>
    %53 = arith.mulf %51, %52 : vector<8x16xf32>
    %c0_27 = arith.constant 0 : index
    %c0_28 = arith.constant 0 : index
    %c0_29 = arith.constant 0 : index
    %c0_30 = arith.constant 0 : index
    %54 = vector.load %arg13[%c0_27, %c0_28, %c0_29, %c0_30] : memref<1x4x8x16xf32, #tpu.memory_space<vmem>>, vector<1x1x8x16xf32>
    %55 = vector.shape_cast %54 : vector<1x1x8x16xf32> to vector<8x16xf32>
    %56 = vector.shape_cast %53 : vector<8x16xf32> to vector<1x1x8x16xf32>
    tpu.vector_store %arg13[%c0_27, %c0_28, %c0_29, %c0_30], %56 {strides = array<i32>} : memref<1x4x8x16xf32, #tpu.memory_space<vmem>>, vector<1x1x8x16xf32>,
    %57 = arith.truncf %41 : vector<8x8xf32> to vector<8x8xbf16>
    %cst_31 = arith.constant dense<0.000000e+00> : vector<8x8xf32>
    %58 = tpu.matmul %57, %25, %cst_31 {dimension_numbers = #tpu.dot_dimension_numbers<[1], [0], [0], [1], [0, 0, 1, 1], [], []>} : vector<8x8xbf16>, vector<8x8xbf16>, vector<8x8xf32> -> vector<8x8xf32>
    %59 = arith.truncf %44 : vector<8x8xf32> to vector<8x8xbf16>
    %cst_32 = arith.constant dense<0.000000e+00> : vector<8x8xf32>
    %60 = tpu.matmul %59, %27, %cst_32 {dimension_numbers = #tpu.dot_dimension_numbers<[1], [0], [0], [1], [0, 0, 1, 1], [], []>} : vector<8x8xbf16>, vector<8x8xbf16>, vector<8x8xf32> -> vector<8x8xf32>
    %61 = arith.addf %58, %60 : vector<8x8xf32>
    %62 = vector.broadcast %50 : vector<8x1xf32> to vector<8x8xf32>
    %63 = arith.mulf %61, %62 : vector<8x8xf32>
    %64 = vector.extract_strided_slice %17 {offsets = [0, 8], sizes = [8, 8], strides = [1, 1]} : vector<8x96xbf16> to vector<8x8xbf16>
    %65 = vector.extract_strided_slice %17 {offsets = [0, 40], sizes = [8, 8], strides = [1, 1]} : vector<8x96xbf16> to vector<8x8xbf16>
    %66 = vector.extract_strided_slice %17 {offsets = [0, 72], sizes = [8, 8], strides = [1, 1]} : vector<8x96xbf16> to vector<8x8xbf16>
    %67 = vector.extract_strided_slice %18 {offsets = [0, 8], sizes = [8, 8], strides = [1, 1]} : vector<8x96xbf16> to vector<8x8xbf16>
    %68 = vector.extract_strided_slice %18 {offsets = [0, 40], sizes = [8, 8], strides = [1, 1]} : vector<8x96xbf16> to vector<8x8xbf16>
    %69 = vector.extract_strided_slice %18 {offsets = [0, 72], sizes = [8, 8], strides = [1, 1]} : vector<8x96xbf16> to vector<8x8xbf16>
    %70 = vector.extract_strided_slice %19 {offsets = [0, 8], sizes = [8, 8], strides = [1, 1]} : vector<8x64xbf16> to vector<8x8xbf16>
    %71 = vector.extract_strided_slice %19 {offsets = [0, 40], sizes = [8, 8], strides = [1, 1]} : vector<8x64xbf16> to vector<8x8xbf16>
    %cst_33 = arith.constant dense<0.000000e+00> : vector<8x8xf32>
    %72 = tpu.matmul %64, %67, %cst_33 {dimension_numbers = #tpu.dot_dimension_numbers<[1], [1], [0], [0], [0, 0, 1, 0], [], []>} : vector<8x8xbf16>, vector<8x8xbf16>, vector<8x8xf32> -> vector<8x8xf32>
    %cst_34 = arith.constant dense<0.000000e+00> : vector<8x8xf32>
    %73 = tpu.matmul %65, %68, %cst_34 {dimension_numbers = #tpu.dot_dimension_numbers<[1], [1], [0], [0], [0, 0, 1, 0], [], []>} : vector<8x8xbf16>, vector<8x8xbf16>, vector<8x8xf32> -> vector<8x8xf32>
    %cst_35 = arith.constant dense<0.000000e+00> : vector<8x8xf32>
    %74 = tpu.matmul %66, %70, %cst_35 {dimension_numbers = #tpu.dot_dimension_numbers<[1], [1], [0], [0], [0, 0, 1, 0], [], []>} : vector<8x8xbf16>, vector<8x8xbf16>, vector<8x8xf32> -> vector<8x8xf32>
    %cst_36 = arith.constant 5.000000e-01 : f32
    %75 = vector.broadcast %cst_36 : f32 to vector<8x8xf32>
    %76 = arith.cmpf ogt, %10, %75 : vector<8x8xf32>
    %77 = arith.select %76, %72, %73 : vector<8x8xi1>, vector<8x8xf32>
    %cst_37 = arith.constant dense<0xFF800000> : vector<8xf32>
    %78 = vector.multi_reduction <maximumf>, %77, %cst_37 [1] : vector<8x8xf32> to vector<8xf32>
    %79 = vector.shape_cast %78 : vector<8xf32> to vector<8x1xf32>
    %cst_38 = arith.constant dense<0xFF800000> : vector<8xf32>
    %80 = vector.multi_reduction <maximumf>, %74, %cst_38 [1] : vector<8x8xf32> to vector<8xf32>
    %81 = vector.shape_cast %80 : vector<8xf32> to vector<8x1xf32>
    %82 = arith.maximumf %79, %81 : vector<8x1xf32>
    %83 = vector.broadcast %82 : vector<8x1xf32> to vector<8x8xf32>
    %84 = arith.subf %77, %83 : vector<8x8xf32>
    %85 = math.exp %84 : vector<8x8xf32>
    %86 = vector.broadcast %82 : vector<8x1xf32> to vector<8x8xf32>
    %87 = arith.subf %74, %86 : vector<8x8xf32>
    %88 = math.exp %87 : vector<8x8xf32>
    %cst_39 = arith.constant dense<0.000000e+00> : vector<8xf32>
    %89 = vector.multi_reduction <add>, %85, %cst_39 [1] : vector<8x8xf32> to vector<8xf32>
    %90 = vector.shape_cast %89 : vector<8xf32> to vector<8x1xf32>
    %cst_40 = arith.constant dense<0.000000e+00> : vector<8xf32>
    %91 = vector.multi_reduction <add>, %88, %cst_40 [1] : vector<8x8xf32> to vector<8xf32>
    %92 = vector.shape_cast %91 : vector<8xf32> to vector<8x1xf32>
    %93 = arith.addf %90, %92 : vector<8x1xf32>
    %94 = tpu.reciprocal %93 {approx = true} : vector<8x1xf32> -> vector<8x1xf32>
    %95 = tpu.concatenate %85, %88 in 1 : vector<8x8xf32>, vector<8x8xf32> -> vector<8x16xf32>
    %96 = vector.broadcast %94 : vector<8x1xf32> to vector<8x16xf32>
    %97 = arith.mulf %95, %96 : vector<8x16xf32>
    %c0_41 = arith.constant 0 : index
    %c1 = arith.constant 1 : index
    %c0_42 = arith.constant 0 : index
    %c0_43 = arith.constant 0 : index
    %98 = vector.load %arg13[%c0_41, %c1, %c0_42, %c0_43] : memref<1x4x8x16xf32, #tpu.memory_space<vmem>>, vector<1x1x8x16xf32>
    %99 = vector.shape_cast %98 : vector<1x1x8x16xf32> to vector<8x16xf32>
    %100 = vector.shape_cast %97 : vector<8x16xf32> to vector<1x1x8x16xf32>
    tpu.vector_store %arg13[%c0_41, %c1, %c0_42, %c0_43], %100 {strides = array<i32>} : memref<1x4x8x16xf32, #tpu.memory_space<vmem>>, vector<1x1x8x16xf32>,
    %101 = arith.truncf %85 : vector<8x8xf32> to vector<8x8xbf16>
    %cst_44 = arith.constant dense<0.000000e+00> : vector<8x8xf32>
    %102 = tpu.matmul %101, %69, %cst_44 {dimension_numbers = #tpu.dot_dimension_numbers<[1], [0], [0], [1], [0, 0, 1, 1], [], []>} : vector<8x8xbf16>, vector<8x8xbf16>, vector<8x8xf32> -> vector<8x8xf32>
    %103 = arith.truncf %88 : vector<8x8xf32> to vector<8x8xbf16>
    %cst_45 = arith.constant dense<0.000000e+00> : vector<8x8xf32>
    %104 = tpu.matmul %103, %71, %cst_45 {dimension_numbers = #tpu.dot_dimension_numbers<[1], [0], [0], [1], [0, 0, 1, 1], [], []>} : vector<8x8xbf16>, vector<8x8xbf16>, vector<8x8xf32> -> vector<8x8xf32>
    %105 = arith.addf %102, %104 : vector<8x8xf32>
    %106 = vector.broadcast %94 : vector<8x1xf32> to vector<8x8xf32>
    %107 = arith.mulf %105, %106 : vector<8x8xf32>
    %108 = vector.extract_strided_slice %17 {offsets = [0, 16], sizes = [8, 8], strides = [1, 1]} : vector<8x96xbf16> to vector<8x8xbf16>
    %109 = vector.extract_strided_slice %17 {offsets = [0, 48], sizes = [8, 8], strides = [1, 1]} : vector<8x96xbf16> to vector<8x8xbf16>
    %110 = vector.extract_strided_slice %17 {offsets = [0, 80], sizes = [8, 8], strides = [1, 1]} : vector<8x96xbf16> to vector<8x8xbf16>
    %111 = vector.extract_strided_slice %18 {offsets = [0, 16], sizes = [8, 8], strides = [1, 1]} : vector<8x96xbf16> to vector<8x8xbf16>
    %112 = vector.extract_strided_slice %18 {offsets = [0, 48], sizes = [8, 8], strides = [1, 1]} : vector<8x96xbf16> to vector<8x8xbf16>
    %113 = vector.extract_strided_slice %18 {offsets = [0, 80], sizes = [8, 8], strides = [1, 1]} : vector<8x96xbf16> to vector<8x8xbf16>
    %114 = vector.extract_strided_slice %19 {offsets = [0, 16], sizes = [8, 8], strides = [1, 1]} : vector<8x64xbf16> to vector<8x8xbf16>
    %115 = vector.extract_strided_slice %19 {offsets = [0, 48], sizes = [8, 8], strides = [1, 1]} : vector<8x64xbf16> to vector<8x8xbf16>
    %cst_46 = arith.constant dense<0.000000e+00> : vector<8x8xf32>
    %116 = tpu.matmul %108, %111, %cst_46 {dimension_numbers = #tpu.dot_dimension_numbers<[1], [1], [0], [0], [0, 0, 1, 0], [], []>} : vector<8x8xbf16>, vector<8x8xbf16>, vector<8x8xf32> -> vector<8x8xf32>
    %cst_47 = arith.constant dense<0.000000e+00> : vector<8x8xf32>
    %117 = tpu.matmul %109, %112, %cst_47 {dimension_numbers = #tpu.dot_dimension_numbers<[1], [1], [0], [0], [0, 0, 1, 0], [], []>} : vector<8x8xbf16>, vector<8x8xbf16>, vector<8x8xf32> -> vector<8x8xf32>
    %cst_48 = arith.constant dense<0.000000e+00> : vector<8x8xf32>
    %118 = tpu.matmul %110, %114, %cst_48 {dimension_numbers = #tpu.dot_dimension_numbers<[1], [1], [0], [0], [0, 0, 1, 0], [], []>} : vector<8x8xbf16>, vector<8x8xbf16>, vector<8x8xf32> -> vector<8x8xf32>
    %cst_49 = arith.constant 5.000000e-01 : f32
    %119 = vector.broadcast %cst_49 : f32 to vector<8x8xf32>
    %120 = arith.cmpf ogt, %10, %119 : vector<8x8xf32>
    %121 = arith.select %120, %116, %117 : vector<8x8xi1>, vector<8x8xf32>
    %cst_50 = arith.constant dense<0xFF800000> : vector<8xf32>
    %122 = vector.multi_reduction <maximumf>, %121, %cst_50 [1] : vector<8x8xf32> to vector<8xf32>
    %123 = vector.shape_cast %122 : vector<8xf32> to vector<8x1xf32>
    %cst_51 = arith.constant dense<0xFF800000> : vector<8xf32>
    %124 = vector.multi_reduction <maximumf>, %118, %cst_51 [1] : vector<8x8xf32> to vector<8xf32>
    %125 = vector.shape_cast %124 : vector<8xf32> to vector<8x1xf32>
    %126 = arith.maximumf %123, %125 : vector<8x1xf32>
    %127 = vector.broadcast %126 : vector<8x1xf32> to vector<8x8xf32>
    %128 = arith.subf %121, %127 : vector<8x8xf32>
    %129 = math.exp %128 : vector<8x8xf32>
    %130 = vector.broadcast %126 : vector<8x1xf32> to vector<8x8xf32>
    %131 = arith.subf %118, %130 : vector<8x8xf32>
    %132 = math.exp %131 : vector<8x8xf32>
    %cst_52 = arith.constant dense<0.000000e+00> : vector<8xf32>
    %133 = vector.multi_reduction <add>, %129, %cst_52 [1] : vector<8x8xf32> to vector<8xf32>
    %134 = vector.shape_cast %133 : vector<8xf32> to vector<8x1xf32>
    %cst_53 = arith.constant dense<0.000000e+00> : vector<8xf32>
    %135 = vector.multi_reduction <add>, %132, %cst_53 [1] : vector<8x8xf32> to vector<8xf32>
    %136 = vector.shape_cast %135 : vector<8xf32> to vector<8x1xf32>
    %137 = arith.addf %134, %136 : vector<8x1xf32>
    %138 = tpu.reciprocal %137 {approx = true} : vector<8x1xf32> -> vector<8x1xf32>
    %139 = tpu.concatenate %129, %132 in 1 : vector<8x8xf32>, vector<8x8xf32> -> vector<8x16xf32>
    %140 = vector.broadcast %138 : vector<8x1xf32> to vector<8x16xf32>
    %141 = arith.mulf %139, %140 : vector<8x16xf32>
    %c0_54 = arith.constant 0 : index
    %c2 = arith.constant 2 : index
    %c0_55 = arith.constant 0 : index
    %c0_56 = arith.constant 0 : index
    %142 = vector.load %arg13[%c0_54, %c2, %c0_55, %c0_56] : memref<1x4x8x16xf32, #tpu.memory_space<vmem>>, vector<1x1x8x16xf32>
    %143 = vector.shape_cast %142 : vector<1x1x8x16xf32> to vector<8x16xf32>
    %144 = vector.shape_cast %141 : vector<8x16xf32> to vector<1x1x8x16xf32>
    tpu.vector_store %arg13[%c0_54, %c2, %c0_55, %c0_56], %144 {strides = array<i32>} : memref<1x4x8x16xf32, #tpu.memory_space<vmem>>, vector<1x1x8x16xf32>,
    %145 = arith.truncf %129 : vector<8x8xf32> to vector<8x8xbf16>
    %cst_57 = arith.constant dense<0.000000e+00> : vector<8x8xf32>
    %146 = tpu.matmul %145, %113, %cst_57 {dimension_numbers = #tpu.dot_dimension_numbers<[1], [0], [0], [1], [0, 0, 1, 1], [], []>} : vector<8x8xbf16>, vector<8x8xbf16>, vector<8x8xf32> -> vector<8x8xf32>
    %147 = arith.truncf %132 : vector<8x8xf32> to vector<8x8xbf16>
    %cst_58 = arith.constant dense<0.000000e+00> : vector<8x8xf32>
    %148 = tpu.matmul %147, %115, %cst_58 {dimension_numbers = #tpu.dot_dimension_numbers<[1], [0], [0], [1], [0, 0, 1, 1], [], []>} : vector<8x8xbf16>, vector<8x8xbf16>, vector<8x8xf32> -> vector<8x8xf32>
    %149 = arith.addf %146, %148 : vector<8x8xf32>
    %150 = vector.broadcast %138 : vector<8x1xf32> to vector<8x8xf32>
    %151 = arith.mulf %149, %150 : vector<8x8xf32>
    %152 = vector.extract_strided_slice %17 {offsets = [0, 24], sizes = [8, 8], strides = [1, 1]} : vector<8x96xbf16> to vector<8x8xbf16>
    %153 = vector.extract_strided_slice %17 {offsets = [0, 56], sizes = [8, 8], strides = [1, 1]} : vector<8x96xbf16> to vector<8x8xbf16>
    %154 = vector.extract_strided_slice %17 {offsets = [0, 88], sizes = [8, 8], strides = [1, 1]} : vector<8x96xbf16> to vector<8x8xbf16>
    %155 = vector.extract_strided_slice %18 {offsets = [0, 24], sizes = [8, 8], strides = [1, 1]} : vector<8x96xbf16> to vector<8x8xbf16>
    %156 = vector.extract_strided_slice %18 {offsets = [0, 56], sizes = [8, 8], strides = [1, 1]} : vector<8x96xbf16> to vector<8x8xbf16>
    %157 = vector.extract_strided_slice %18 {offsets = [0, 88], sizes = [8, 8], strides = [1, 1]} : vector<8x96xbf16> to vector<8x8xbf16>
    %158 = vector.extract_strided_slice %19 {offsets = [0, 24], sizes = [8, 8], strides = [1, 1]} : vector<8x64xbf16> to vector<8x8xbf16>
    %159 = vector.extract_strided_slice %19 {offsets = [0, 56], sizes = [8, 8], strides = [1, 1]} : vector<8x64xbf16> to vector<8x8xbf16>
    %cst_59 = arith.constant dense<0.000000e+00> : vector<8x8xf32>
    %160 = tpu.matmul %152, %155, %cst_59 {dimension_numbers = #tpu.dot_dimension_numbers<[1], [1], [0], [0], [0, 0, 1, 0], [], []>} : vector<8x8xbf16>, vector<8x8xbf16>, vector<8x8xf32> -> vector<8x8xf32>
    %cst_60 = arith.constant dense<0.000000e+00> : vector<8x8xf32>
    %161 = tpu.matmul %153, %156, %cst_60 {dimension_numbers = #tpu.dot_dimension_numbers<[1], [1], [0], [0], [0, 0, 1, 0], [], []>} : vector<8x8xbf16>, vector<8x8xbf16>, vector<8x8xf32> -> vector<8x8xf32>
    %cst_61 = arith.constant dense<0.000000e+00> : vector<8x8xf32>
    %162 = tpu.matmul %154, %158, %cst_61 {dimension_numbers = #tpu.dot_dimension_numbers<[1], [1], [0], [0], [0, 0, 1, 0], [], []>} : vector<8x8xbf16>, vector<8x8xbf16>, vector<8x8xf32> -> vector<8x8xf32>
    %cst_62 = arith.constant 5.000000e-01 : f32
    %163 = vector.broadcast %cst_62 : f32 to vector<8x8xf32>
    %164 = arith.cmpf ogt, %10, %163 : vector<8x8xf32>
    %165 = arith.select %164, %160, %161 : vector<8x8xi1>, vector<8x8xf32>
    %cst_63 = arith.constant dense<0xFF800000> : vector<8xf32>
    %166 = vector.multi_reduction <maximumf>, %165, %cst_63 [1] : vector<8x8xf32> to vector<8xf32>
    %167 = vector.shape_cast %166 : vector<8xf32> to vector<8x1xf32>
    %cst_64 = arith.constant dense<0xFF800000> : vector<8xf32>
    %168 = vector.multi_reduction <maximumf>, %162, %cst_64 [1] : vector<8x8xf32> to vector<8xf32>
    %169 = vector.shape_cast %168 : vector<8xf32> to vector<8x1xf32>
    %170 = arith.maximumf %167, %169 : vector<8x1xf32>
    %171 = vector.broadcast %170 : vector<8x1xf32> to vector<8x8xf32>
    %172 = arith.subf %165, %171 : vector<8x8xf32>
    %173 = math.exp %172 : vector<8x8xf32>
    %174 = vector.broadcast %170 : vector<8x1xf32> to vector<8x8xf32>
    %175 = arith.subf %162, %174 : vector<8x8xf32>
    %176 = math.exp %175 : vector<8x8xf32>
    %cst_65 = arith.constant dense<0.000000e+00> : vector<8xf32>
    %177 = vector.multi_reduction <add>, %173, %cst_65 [1] : vector<8x8xf32> to vector<8xf32>
    %178 = vector.shape_cast %177 : vector<8xf32> to vector<8x1xf32>
    %cst_66 = arith.constant dense<0.000000e+00> : vector<8xf32>
    %179 = vector.multi_reduction <add>, %176, %cst_66 [1] : vector<8x8xf32> to vector<8xf32>
    %180 = vector.shape_cast %179 : vector<8xf32> to vector<8x1xf32>
    %181 = arith.addf %178, %180 : vector<8x1xf32>
    %182 = tpu.reciprocal %181 {approx = true} : vector<8x1xf32> -> vector<8x1xf32>
    %183 = tpu.concatenate %173, %176 in 1 : vector<8x8xf32>, vector<8x8xf32> -> vector<8x16xf32>
    %184 = vector.broadcast %182 : vector<8x1xf32> to vector<8x16xf32>
    %185 = arith.mulf %183, %184 : vector<8x16xf32>
    %c0_67 = arith.constant 0 : index
    %c3 = arith.constant 3 : index
    %c0_68 = arith.constant 0 : index
    %c0_69 = arith.constant 0 : index
    %186 = vector.load %arg13[%c0_67, %c3, %c0_68, %c0_69] : memref<1x4x8x16xf32, #tpu.memory_space<vmem>>, vector<1x1x8x16xf32>
    %187 = vector.shape_cast %186 : vector<1x1x8x16xf32> to vector<8x16xf32>
    %188 = vector.shape_cast %185 : vector<8x16xf32> to vector<1x1x8x16xf32>
    tpu.vector_store %arg13[%c0_67, %c3, %c0_68, %c0_69], %188 {strides = array<i32>} : memref<1x4x8x16xf32, #tpu.memory_space<vmem>>, vector<1x1x8x16xf32>,
    %189 = arith.truncf %173 : vector<8x8xf32> to vector<8x8xbf16>
    %cst_70 = arith.constant dense<0.000000e+00> : vector<8x8xf32>
    %190 = tpu.matmul %189, %157, %cst_70 {dimension_numbers = #tpu.dot_dimension_numbers<[1], [0], [0], [1], [0, 0, 1, 1], [], []>} : vector<8x8xbf16>, vector<8x8xbf16>, vector<8x8xf32> -> vector<8x8xf32>
    %191 = arith.truncf %176 : vector<8x8xf32> to vector<8x8xbf16>
    %cst_71 = arith.constant dense<0.000000e+00> : vector<8x8xf32>
    %192 = tpu.matmul %191, %159, %cst_71 {dimension_numbers = #tpu.dot_dimension_numbers<[1], [0], [0], [1], [0, 0, 1, 1], [], []>} : vector<8x8xbf16>, vector<8x8xbf16>, vector<8x8xf32> -> vector<8x8xf32>
    %193 = arith.addf %190, %192 : vector<8x8xf32>
    %194 = vector.broadcast %182 : vector<8x1xf32> to vector<8x8xf32>
    %195 = arith.mulf %193, %194 : vector<8x8xf32>
    %196 = tpu.concatenate %63, %107, %151, %195 in 1 : vector<8x8xf32>, vector<8x8xf32>, vector<8x8xf32>, vector<8x8xf32> -> vector<8x32xf32>
    %197 = arith.truncf %196 : vector<8x32xf32> to vector<8x32xbf16>
    %c0_72 = arith.constant 0 : index
    %c0_73 = arith.constant 0 : index
    %198 = vector.load %arg8[%c0_72, %c0_73] : memref<32x32xbf16, #tpu.memory_space<vmem>>, vector<32x32xbf16>
    %cst_74 = arith.constant dense<0.000000e+00> : vector<8x32xf32>
    %199 = tpu.matmul %197, %198, %cst_74 {dimension_numbers = #tpu.dot_dimension_numbers<[1], [0], [0], [1], [0, 0, 1, 1], [], []>} : vector<8x32xbf16>, vector<32x32xbf16>, vector<8x32xf32> -> vector<8x32xf32>
    %c0_75 = arith.constant 0 : index
    %c0_76 = arith.constant 0 : index
    %200 = vector.load %arg9[%c0_75, %c0_76] : memref<1x32xf32, #tpu.memory_space<vmem>>, vector<1x32xf32>
    %201 = vector.broadcast %200 : vector<1x32xf32> to vector<8x32xf32>
    %202 = arith.addf %199, %201 : vector<8x32xf32>
    %203 = arith.addf %202, %1 : vector<8x32xf32>
    %cst_77 = arith.constant dense<0.000000e+00> : vector<8xf32>
    %204 = vector.multi_reduction <add>, %203, %cst_77 [1] : vector<8x32xf32> to vector<8xf32>
    %205 = vector.shape_cast %204 : vector<8xf32> to vector<8x1xf32>
    %cst_78 = arith.constant 3.200000e+01 : f32
    %206 = vector.broadcast %cst_78 : f32 to vector<8x1xf32>
    %207 = arith.divf %205, %206 : vector<8x1xf32>
    %208 = vector.broadcast %207 : vector<8x1xf32> to vector<8x32xf32>
    %209 = arith.subf %203, %208 : vector<8x32xf32>
    %210 = arith.mulf %209, %209 : vector<8x32xf32>
    %cst_79 = arith.constant dense<0.000000e+00> : vector<8xf32>
    %211 = vector.multi_reduction <add>, %210, %cst_79 [1] : vector<8x32xf32> to vector<8xf32>
    %212 = vector.shape_cast %211 : vector<8xf32> to vector<8x1xf32>
    %cst_80 = arith.constant 3.200000e+01 : f32
    %213 = vector.broadcast %cst_80 : f32 to vector<8x1xf32>
    %214 = arith.divf %212, %213 : vector<8x1xf32>
    %215 = vector.broadcast %207 : vector<8x1xf32> to vector<8x32xf32>
    %216 = arith.subf %203, %215 : vector<8x32xf32>
    %cst_81 = arith.constant 9.99999974E-6 : f32
    %217 = vector.broadcast %cst_81 : f32 to vector<8x1xf32>
    %218 = arith.addf %214, %217 : vector<8x1xf32>
    %219 = math.rsqrt %218 : vector<8x1xf32>
    %220 = vector.broadcast %219 : vector<8x1xf32> to vector<8x32xf32>
    %221 = arith.mulf %216, %220 : vector<8x32xf32>
    %c0_82 = arith.constant 0 : index
    %c0_83 = arith.constant 0 : index
    %222 = vector.load %arg10[%c0_82, %c0_83] : memref<1x32xf32, #tpu.memory_space<vmem>>, vector<1x32xf32>
    %223 = vector.broadcast %222 : vector<1x32xf32> to vector<8x32xf32>
    %224 = arith.mulf %221, %223 : vector<8x32xf32>
    %c0_84 = arith.constant 0 : index
    %c0_85 = arith.constant 0 : index
    %225 = vector.load %arg11[%c0_84, %c0_85] : memref<1x32xf32, #tpu.memory_space<vmem>>, vector<1x32xf32>
    %226 = vector.broadcast %225 : vector<1x32xf32> to vector<8x32xf32>
    %227 = arith.addf %224, %226 : vector<8x32xf32>
    %c0_86 = arith.constant 0 : index
    %c0_87 = arith.constant 0 : index
    %c0_88 = arith.constant 0 : index
    %228 = vector.load %arg12[%c0_86, %c0_87, %c0_88] : memref<1x8x32xf32, #tpu.memory_space<vmem>>, vector<1x8x32xf32>
    %229 = vector.shape_cast %228 : vector<1x8x32xf32> to vector<8x32xf32>
    %230 = vector.shape_cast %227 : vector<8x32xf32> to vector<1x8x32xf32>
    tpu.vector_store %arg12[%c0_86, %c0_87, %c0_88], %230 {strides = array<i32>} : memref<1x8x32xf32, #tpu.memory_space<vmem>>, vector<1x8x32xf32>,
    return
  }
  func.func @transform_0(%arg0: i32) -> (i32, i32, i32) {
    %c0_i32 = arith.constant 0 : i32
    %c0_i32_0 = arith.constant 0 : i32
    %c0_i32_1 = arith.constant 0 : i32
    return %arg0, %c0_i32, %c0_i32_0 : i32, i32, i32
  }
  func.func @transform_1(%arg0: i32) -> (i32, i32, i32) {
    %c0_i32 = arith.constant 0 : i32
    %c0_i32_0 = arith.constant 0 : i32
    %c0_i32_1 = arith.constant 0 : i32
    return %arg0, %c0_i32, %c0_i32_0 : i32, i32, i32
  }
  func.func @transform_2(%arg0: i32) -> (i32, i32, i32) {
    %c0_i32 = arith.constant 0 : i32
    %c0_i32_0 = arith.constant 0 : i32
    %c0_i32_1 = arith.constant 0 : i32
    return %arg0, %c0_i32, %c0_i32_0 : i32, i32, i32
  }
  func.func @transform_3(%arg0: i32) -> (i32, i32, i32) {
    %c0_i32 = arith.constant 0 : i32
    %c0_i32_0 = arith.constant 0 : i32
    %c0_i32_1 = arith.constant 0 : i32
    return %arg0, %c0_i32, %c0_i32_0 : i32, i32, i32
  }
  func.func @transform_4(%arg0: i32) -> (i32, i32) {
    %c0_i32 = arith.constant 0 : i32
    %c0_i32_0 = arith.constant 0 : i32
    %c0_i32_1 = arith.constant 0 : i32
    return %c0_i32, %c0_i32_0 : i32, i32
  }
  func.func @transform_5(%arg0: i32) -> (i32, i32) {
    %c0_i32 = arith.constant 0 : i32
    %c0_i32_0 = arith.constant 0 : i32
    %c0_i32_1 = arith.constant 0 : i32
    return %c0_i32, %c0_i32_0 : i32, i32
  }
  func.func @transform_6(%arg0: i32) -> (i32, i32) {
    %c0_i32 = arith.constant 0 : i32
    %c0_i32_0 = arith.constant 0 : i32
    %c0_i32_1 = arith.constant 0 : i32
    return %c0_i32, %c0_i32_0 : i32, i32
  }
  func.func @transform_7(%arg0: i32) -> (i32, i32) {
    %c0_i32 = arith.constant 0 : i32
    %c0_i32_0 = arith.constant 0 : i32
    %c0_i32_1 = arith.constant 0 : i32
    return %c0_i32, %c0_i32_0 : i32, i32
  }
  func.func @transform_8(%arg0: i32) -> (i32, i32) {
    %c0_i32 = arith.constant 0 : i32
    %c0_i32_0 = arith.constant 0 : i32
    %c0_i32_1 = arith.constant 0 : i32
    return %c0_i32, %c0_i32_0 : i32, i32
  }
  func.func @transform_9(%arg0: i32) -> (i32, i32) {
    %c0_i32 = arith.constant 0 : i32
    %c0_i32_0 = arith.constant 0 : i32
    %c0_i32_1 = arith.constant 0 : i32
    return %c0_i32, %c0_i32_0 : i32, i32
  }
  func.func @transform_10(%arg0: i32) -> (i32, i32) {
    %c0_i32 = arith.constant 0 : i32
    %c0_i32_0 = arith.constant 0 : i32
    %c0_i32_1 = arith.constant 0 : i32
    return %c0_i32, %c0_i32_0 : i32, i32
  }
  func.func @transform_11(%arg0: i32) -> (i32, i32, i32) {
    %c0_i32 = arith.constant 0 : i32
    %c0_i32_0 = arith.constant 0 : i32
    %c0_i32_1 = arith.constant 0 : i32
    return %arg0, %c0_i32, %c0_i32_0 : i32, i32, i32
  }
  func.func @transform_12(%arg0: i32) -> (i32, i32, i32, i32) {
    %c0_i32 = arith.constant 0 : i32
    %c0_i32_0 = arith.constant 0 : i32
    %c0_i32_1 = arith.constant 0 : i32
    %c0_i32_2 = arith.constant 0 : i32
    return %arg0, %c0_i32, %c0_i32_0, %c0_i32_1 : i32, i32, i32, i32
  }
}

</mosaic_0001>

<llo_original>
// kernel: tpu_custom_call.1
$region0: #{tpu_custom_call.1}
  #allocation0 [shape = 'u32[]', space=smem, size = 0x4, offset = 0x4, fixed_abs, tag = 'smem constant byte address 0x4 - core index']
  #allocation1 [shape = 'u32[144,128]{1,0:T(1,128)}', space=vmem, size = 0x12000, scoped, tag = 'internal scratch']
  %s0 = inlined_call_operand.hbm [shape: f32[2,8,32], index: 0, kind: input, shape index: {}]
  %s1 = inlined_call_operand.hbm [shape: f32[2,8,32], index: 1, kind: input, shape index: {}]
  %s2 = inlined_call_operand.hbm [shape: f32[2,8,32], index: 2, kind: input, shape index: {}]
  %s3 = inlined_call_operand.hbm [shape: f32[2,8,8], index: 3, kind: input, shape index: {}]
  %s4 = inlined_call_operand.hbm [shape: bf16[32,96], index: 4, kind: input, shape index: {}]
  %s5 = inlined_call_operand.vmem [shape: bf16[32,96], index: 5, kind: input, shape index: {}]
  %s6 = inlined_call_operand.hbm [shape: bf16[32,64], index: 6, kind: input, shape index: {}]
  %s7 = inlined_call_operand.hbm [shape: bf16[32,32], index: 7, kind: input, shape index: {}]
  %s8 = inlined_call_operand.vmem [shape: f32[1,32], index: 8, kind: input, shape index: {}]
  %s9 = inlined_call_operand.vmem [shape: f32[1,32], index: 9, kind: input, shape index: {}]
  %s10 = inlined_call_operand.vmem [shape: f32[1,32], index: 10, kind: input, shape index: {}]
  %s11 = inlined_call_operand.hbm [shape: f32[2,8,32], index: 11, kind: output, shape index: {0}]
  %s12 = inlined_call_operand.hbm [shape: f32[2,4,8,16], index: 12, kind: output, shape index: {1}]
  %13 = xla_tuple %s11, %s12
  %s14 = sld [smem:[#allocation0]]
  $region113: #{tpu_custom_call.1} parent=0
    _
  %s16 = ssub.s32 1, %s14
  %s17 = scalar_select 0, %s16, %s14
  $region1: #{tpu_custom_call.1} parent=0
    #allocation2 [shape = 'u8[8192]{0}', space=vmem, size = 0x2000, scoped, tag = 'input window, operand 0']
    #allocation3 [shape = 's32[2]{0}', space=sflag, size = 0x8, scoped, tag = 'scoped memory for tpu_custom_call.1']
    #allocation4 [shape = 's32[2]{0}', space=sflag, size = 0x8, scoped, tag = 'scoped memory for tpu_custom_call.1']
    #allocation5 [shape = 'u8[8192]{0}', space=vmem, size = 0x2000, scoped, tag = 'input window, operand 1']
    #allocation6 [shape = 's32[2]{0}', space=sflag, size = 0x8, scoped, tag = 'scoped memory for tpu_custom_call.1']
    #allocation7 [shape = 'u8[8192]{0}', space=vmem, size = 0x2000, scoped, tag = 'input window, operand 2']
    #allocation8 [shape = 'u8[8192]{0}', space=vmem, size = 0x2000, scoped, tag = 'input window, operand 3']
    #allocation9 [shape = 's32[2]{0}', space=sflag, size = 0x8, scoped, tag = 'scoped memory for tpu_custom_call.1']
    #allocation10 [shape = 'u8[8192]{0}', space=vmem, size = 0x2000, scoped, tag = 'input window, operand 4, single buffered']
    #allocation11 [shape = 'u8[8192]{0}', space=vmem, size = 0x2000, scoped, tag = 'input window, operand 6, single buffered']
    #allocation12 [shape = 's32[1]{0}', space=sflag, size = 0x4, scoped, tag = 'scoped memory for tpu_custom_call.1']
    #allocation13 [shape = 'u8[8192]{0}', space=vmem, size = 0x2000, scoped, tag = 'input window, operand 7, single buffered']
    #allocation14 [shape = 'u8[8192]{0}', space=vmem, size = 0x2000, scoped, tag = 'output window, operand 0']
    #allocation15 [shape = 'u8[32768]{0}', space=vmem, size = 0x8000, scoped, tag = 'output window, operand 1']
    #allocation16 [shape = 's32[2]{0}', space=sflag, size = 0x8, scoped, tag = 'scoped memory for tpu_custom_call.1']
    %18 = vsyncpa [#allocation3], 0
    %s19 = scalar_lea.sflag [#allocation3], 1
    %20 = vsyncpa %s19, 0
    %21 = vsyncpa [#allocation6], 0
    %s22 = scalar_lea.sflag [#allocation6], 1
    %23 = vsyncpa %s22, 0
    %24 = vsyncpa [#allocation9], 0
    %s25 = scalar_lea.sflag [#allocation9], 1
    %26 = vsyncpa %s25, 0
    %27 = vsyncpa [#allocation12], 0
    %28 = vsyncpa [#allocation4], 0
    %s29 = scalar_lea.sflag [#allocation4], 1
    %30 = vsyncpa %s29, 0
    %31 = vsyncpa [#allocation16], 0
    %s32 = scalar_lea.sflag [#allocation16], 1
    %33 = vsyncpa %s32, 0
    loop: start=0, step=1, limit=4
    $region2: #{tpu_custom_call.1} parent=1 // loop_pre_header
      _
    $region3: #{tpu_custom_call.1} parent=1 // loop_header
      %s35 = sphi 0, %s39
      %p36 = scmp.ge.s32.totalorder %s35, 4
      %s45 = sphi 0, %s47
      %s48 = sphi 0, %s45
      %s49 = sphi 0, %s48
      %s65 = sphi 0, %s49
      %s71 = sphi 0, %s73
      %s74 = sphi 0, %s71
      %s75 = sphi 0, %s74
      %s91 = sphi 0, %s75
      %s97 = sphi 0, %s99
      %s100 = sphi 0, %s97
      %s101 = sphi 0, %s100
      %s117 = sphi 0, %s101
      %s123 = sphi 0, %s125
      %s126 = sphi 0, %s123
      %s127 = sphi 0, %s126
      %s143 = sphi 0, %s127
      %s147 = sphi 0, %s147
      %s149 = sphi 0, %s147
      %s150 = sphi 0, %s149
      %s164 = sphi 0, %s150
      %s168 = sphi 0, %s168
      %s170 = sphi 0, %s168
      %s171 = sphi 0, %s170
      %s185 = sphi 0, %s171
      %s189 = sphi 0, %s189
      %s191 = sphi 0, %s189
      %s192 = sphi 0, %s191
      %s206 = sphi 0, %s192
      %s210 = sphi 0, %s210
      %s212 = sphi 0, %s210
      %s213 = sphi 0, %s212
      %s227 = sphi 0, %s213
      %s231 = sphi 0, %s231
      %s233 = sphi 0, %s231
      %s234 = sphi 0, %s233
      %s248 = sphi 0, %s234
      %s252 = sphi 0, %s252
      %s254 = sphi 0, %s252
      %s255 = sphi 0, %s254
      %s269 = sphi 0, %s255
      %s273 = sphi 0, %s273
      %s275 = sphi 0, %s273
      %s276 = sphi 0, %s275
      %s290 = sphi 0, %s276
      %s296 = sphi 0, %s298
      %s299 = sphi 0, %s296
      %s300 = sphi 0, %s299
      %s316 = sphi 0, %s300
      %s322 = sphi 0, %s324
      %s325 = sphi 0, %s322
      %s326 = sphi 0, %s325
      %s342 = sphi 0, %s326
    $region4: #{tpu_custom_call.1} parent=1 // loop_header_branch
      %38 = sbr.rel (%p36) target = $region8
    $region5: #{tpu_custom_call.1} parent=1 // loop_body
      %s40 = ssub.s32 %s35, 1
      %s41 = ssub.s32 %s35, 2
      %s42 = sadd.s32 %s35, 1
      %s43 = ssub.s32 %s35, %s42
      %p44 = scmp.eq.s32.totalorder %s43, 0
      %s46 = sadd.s32 %s45, 1
      %s47 = scalar_select %p44, %s45, %s46
      %p50 = pneg %p44
      %p51 = scmp.eq.s32.totalorder %s35, 1
      %p52 = por %p50, %p51
      %p53 = scmp.ne.s32.totalorder %s45, %s48
      %p54 = scmp.eq.s32.totalorder %s35, 0
      %p55 = por %p53, %p54
      %p56 = scmp.ne.s32.totalorder %s45, %s48
      %p57 = scmp.eq.s32.totalorder %s40, 1
      %p58 = por %p56, %p57
      %p59 = scmp.ne.s32.totalorder %s48, %s49
      %p60 = scmp.eq.s32.totalorder %s40, 0
      %p61 = por %p59, %p60
      %p62 = scmp.ne.s32.totalorder %s48, %s49
      %p63 = scmp.eq.s32.totalorder %s41, 1
      %p64 = por %p62, %p63
      %p66 = scmp.ne.s32.totalorder %s49, %s65
      %p67 = scmp.eq.s32.totalorder %s41, 0
      %p68 = por %p66, %p67
      %s69 = ssub.s32 %s35, %s42
      %p70 = scmp.eq.s32.totalorder %s69, 0
      %s72 = sadd.s32 %s71, 1
      %s73 = scalar_select %p70, %s71, %s72
      %p76 = pneg %p70
      %p77 = scmp.eq.s32.totalorder %s35, 1
      %p78 = por %p76, %p77
      %p79 = scmp.ne.s32.totalorder %s71, %s74
      %p80 = scmp.eq.s32.totalorder %s35, 0
      %p81 = por %p79, %p80
      %p82 = scmp.ne.s32.totalorder %s71, %s74
      %p83 = scmp.eq.s32.totalorder %s40, 1
      %p84 = por %p82, %p83
      %p85 = scmp.ne.s32.totalorder %s74, %s75
      %p86 = scmp.eq.s32.totalorder %s40, 0
      %p87 = por %p85, %p86
      %p88 = scmp.ne.s32.totalorder %s74, %s75
      %p89 = scmp.eq.s32.totalorder %s41, 1
      %p90 = por %p88, %p89
      %p92 = scmp.ne.s32.totalorder %s75, %s91
      %p93 = scmp.eq.s32.totalorder %s41, 0
      %p94 = por %p92, %p93
      %s95 = ssub.s32 %s35, %s42
      %p96 = scmp.eq.s32.totalorder %s95, 0
      %s98 = sadd.s32 %s97, 1
      %s99 = scalar_select %p96, %s97, %s98
      %p102 = pneg %p96
      %p103 = scmp.eq.s32.totalorder %s35, 1
      %p104 = por %p102, %p103
      %p105 = scmp.ne.s32.totalorder %s97, %s100
      %p106 = scmp.eq.s32.totalorder %s35, 0
      %p107 = por %p105, %p106
      %p108 = scmp.ne.s32.totalorder %s97, %s100
      %p109 = scmp.eq.s32.totalorder %s40, 1
      %p110 = por %p108, %p109
      %p111 = scmp.ne.s32.totalorder %s100, %s101
      %p112 = scmp.eq.s32.totalorder %s40, 0
      %p113 = por %p111, %p112
      %p114 = scmp.ne.s32.totalorder %s100, %s101
      %p115 = scmp.eq.s32.totalorder %s41, 1
      %p116 = por %p114, %p115
      %p118 = scmp.ne.s32.totalorder %s101, %s117
      %p119 = scmp.eq.s32.totalorder %s41, 0
      %p120 = por %p118, %p119
      %s121 = ssub.s32 %s35, %s42
      %p122 = scmp.eq.s32.totalorder %s121, 0
      %s124 = sadd.s32 %s123, 1
      %s125 = scalar_select %p122, %s123, %s124
      %p128 = pneg %p122
      %p129 = scmp.eq.s32.totalorder %s35, 1
      %p130 = por %p128, %p129
      %p131 = scmp.ne.s32.totalorder %s123, %s126
      %p132 = scmp.eq.s32.totalorder %s35, 0
      %p133 = por %p131, %p132
      %p134 = scmp.ne.s32.totalorder %s123, %s126
      %p135 = scmp.eq.s32.totalorder %s40, 1
      %p136 = por %p134, %p135
      %p137 = scmp.ne.s32.totalorder %s126, %s127
      %p138 = scmp.eq.s32.totalorder %s40, 0
      %p139 = por %p137, %p138
      %p140 = scmp.ne.s32.totalorder %s126, %s127
      %p141 = scmp.eq.s32.totalorder %s41, 1
      %p142 = por %p140, %p141
      %p144 = scmp.ne.s32.totalorder %s127, %s143
      %p145 = scmp.eq.s32.totalorder %s41, 0
      %p146 = por %p144, %p145
      %s148 = sadd.s32 %s147, 1
      %p151 = scmp.eq.s32.totalorder %s35, 1
      %p152 = scmp.ne.s32.totalorder %s147, %s149
      %p153 = scmp.eq.s32.totalorder %s35, 0
      %p154 = por %p152, %p153
      %p155 = scmp.ne.s32.totalorder %s147, %s149
      %p156 = scmp.eq.s32.totalorder %s40, 1
      %p157 = por %p155, %p156
      %p158 = scmp.ne.s32.totalorder %s149, %s150
      %p159 = scmp.eq.s32.totalorder %s40, 0
      %p160 = por %p158, %p159
      %p161 = scmp.ne.s32.totalorder %s149, %s150
      %p162 = scmp.eq.s32.totalorder %s41, 1
      %p163 = por %p161, %p162
      %p165 = scmp.ne.s32.totalorder %s150, %s164
      %p166 = scmp.eq.s32.totalorder %s41, 0
      %p167 = por %p165, %p166
      %s169 = sadd.s32 %s168, 1
      %p172 = scmp.eq.s32.totalorder %s35, 1
      %p173 = scmp.ne.s32.totalorder %s168, %s170
      %p174 = scmp.eq.s32.totalorder %s35, 0
      %p175 = por %p173, %p174
      %p176 = scmp.ne.s32.totalorder %s168, %s170
      %p177 = scmp.eq.s32.totalorder %s40, 1
      %p178 = por %p176, %p177
      %p179 = scmp.ne.s32.totalorder %s170, %s171
      %p180 = scmp.eq.s32.totalorder %s40, 0
      %p181 = por %p179, %p180
      %p182 = scmp.ne.s32.totalorder %s170, %s171
      %p183 = scmp.eq.s32.totalorder %s41, 1
      %p184 = por %p182, %p183
      %p186 = scmp.ne.s32.totalorder %s171, %s185
      %p187 = scmp.eq.s32.totalorder %s41, 0
      %p188 = por %p186, %p187
      %s190 = sadd.s32 %s189, 1
      %p193 = scmp.eq.s32.totalorder %s35, 1
      %p194 = scmp.ne.s32.totalorder %s189, %s191
      %p195 = scmp.eq.s32.totalorder %s35, 0
      %p196 = por %p194, %p195
      %p197 = scmp.ne.s32.totalorder %s189, %s191
      %p198 = scmp.eq.s32.totalorder %s40, 1
      %p199 = por %p197, %p198
      %p200 = scmp.ne.s32.totalorder %s191, %s192
      %p201 = scmp.eq.s32.totalorder %s40, 0
      %p202 = por %p200, %p201
      %p203 = scmp.ne.s32.totalorder %s191, %s192
      %p204 = scmp.eq.s32.totalorder %s41, 1
      %p205 = por %p203, %p204
      %p207 = scmp.ne.s32.totalorder %s192, %s206
      %p208 = scmp.eq.s32.totalorder %s41, 0
      %p209 = por %p207, %p208
      %s211 = sadd.s32 %s210, 1
      %p214 = scmp.eq.s32.totalorder %s35, 1
      %p215 = scmp.ne.s32.totalorder %s210, %s212
      %p216 = scmp.eq.s32.totalorder %s35, 0
      %p217 = por %p215, %p216
      %p218 = scmp.ne.s32.totalorder %s210, %s212
      %p219 = scmp.eq.s32.totalorder %s40, 1
      %p220 = por %p218, %p219
      %p221 = scmp.ne.s32.totalorder %s212, %s213
      %p222 = scmp.eq.s32.totalorder %s40, 0
      %p223 = por %p221, %p222
      %p224 = scmp.ne.s32.totalorder %s212, %s213
      %p225 = scmp.eq.s32.totalorder %s41, 1
      %p226 = por %p224, %p225
      %p228 = scmp.ne.s32.totalorder %s213, %s227
      %p229 = scmp.eq.s32.totalorder %s41, 0
      %p230 = por %p228, %p229
      %s232 = sadd.s32 %s231, 1
      %p235 = scmp.eq.s32.totalorder %s35, 1
      %p236 = scmp.ne.s32.totalorder %s231, %s233
      %p237 = scmp.eq.s32.totalorder %s35, 0
      %p238 = por %p236, %p237
      %p239 = scmp.ne.s32.totalorder %s231, %s233
      %p240 = scmp.eq.s32.totalorder %s40, 1
      %p241 = por %p239, %p240
      %p242 = scmp.ne.s32.totalorder %s233, %s234
      %p243 = scmp.eq.s32.totalorder %s40, 0
      %p244 = por %p242, %p243
      %p245 = scmp.ne.s32.totalorder %s233, %s234
      %p246 = scmp.eq.s32.totalorder %s41, 1
      %p247 = por %p245, %p246
      %p249 = scmp.ne.s32.totalorder %s234, %s248
      %p250 = scmp.eq.s32.totalorder %s41, 0
      %p251 = por %p249, %p250
      %s253 = sadd.s32 %s252, 1
      %p256 = scmp.eq.s32.totalorder %s35, 1
      %p257 = scmp.ne.s32.totalorder %s252, %s254
      %p258 = scmp.eq.s32.totalorder %s35, 0
      %p259 = por %p257, %p258
      %p260 = scmp.ne.s32.totalorder %s252, %s254
      %p261 = scmp.eq.s32.totalorder %s40, 1
      %p262 = por %p260, %p261
      %p263 = scmp.ne.s32.totalorder %s254, %s255
      %p264 = scmp.eq.s32.totalorder %s40, 0
      %p265 = por %p263, %p264
      %p266 = scmp.ne.s32.totalorder %s254, %s255
      %p267 = scmp.eq.s32.totalorder %s41, 1
      %p268 = por %p266, %p267
      %p270 = scmp.ne.s32.totalorder %s255, %s269
      %p271 = scmp.eq.s32.totalorder %s41, 0
      %p272 = por %p270, %p271
      %s274 = sadd.s32 %s273, 1
      %p277 = scmp.eq.s32.totalorder %s35, 1
      %p278 = scmp.ne.s32.totalorder %s273, %s275
      %p279 = scmp.eq.s32.totalorder %s35, 0
      %p280 = por %p278, %p279
      %p281 = scmp.ne.s32.totalorder %s273, %s275
      %p282 = scmp.eq.s32.totalorder %s40, 1
      %p283 = por %p281, %p282
      %p284 = scmp.ne.s32.totalorder %s275, %s276
      %p285 = scmp.eq.s32.totalorder %s40, 0
      %p286 = por %p284, %p285
      %p287 = scmp.ne.s32.totalorder %s275, %s276
      %p288 = scmp.eq.s32.totalorder %s41, 1
      %p289 = por %p287, %p288
      %p291 = scmp.ne.s32.totalorder %s276, %s290
      %p292 = scmp.eq.s32.totalorder %s41, 0
      %p293 = por %p291, %p292
      %s294 = ssub.s32 %s35, %s42
      %p295 = scmp.eq.s32.totalorder %s294, 0
      %s297 = sadd.s32 %s296, 1
      %s298 = scalar_select %p295, %s296, %s297
      %p301 = pneg %p295
      %p302 = scmp.eq.s32.totalorder %s35, 1
      %p303 = por %p301, %p302
      %p304 = scmp.ne.s32.totalorder %s296, %s299
      %p305 = scmp.eq.s32.totalorder %s35, 0
      %p306 = por %p304, %p305
      %p307 = scmp.ne.s32.totalorder %s296, %s299
      %p308 = scmp.eq.s32.totalorder %s40, 1
      %p309 = por %p307, %p308
      %p310 = scmp.ne.s32.totalorder %s299, %s300
      %p311 = scmp.eq.s32.totalorder %s40, 0
      %p312 = por %p310, %p311
      %p313 = scmp.ne.s32.totalorder %s299, %s300
      %p314 = scmp.eq.s32.totalorder %s41, 1
      %p315 = por %p313, %p314
      %p317 = scmp.ne.s32.totalorder %s300, %s316
      %p318 = scmp.eq.s32.totalorder %s41, 0
      %p319 = por %p317, %p318
      %s320 = ssub.s32 %s35, %s42
      %p321 = scmp.eq.s32.totalorder %s320, 0
      %s323 = sadd.s32 %s322, 1
      %s324 = scalar_select %p321, %s322, %s323
      %p327 = pneg %p321
      %p328 = scmp.eq.s32.totalorder %s35, 1
      %p329 = por %p327, %p328
      %p330 = scmp.ne.s32.totalorder %s322, %s325
      %p331 = scmp.eq.s32.totalorder %s35, 0
      %p332 = por %p330, %p331
      %p333 = scmp.ne.s32.totalorder %s322, %s325
      %p334 = scmp.eq.s32.totalorder %s40, 1
      %p335 = por %p333, %p334
      %p336 = scmp.ne.s32.totalorder %s325, %s326
      %p337 = scmp.eq.s32.totalorder %s40, 0
      %p338 = por %p336, %p337
      %p339 = scmp.ne.s32.totalorder %s325, %s326
      %p340 = scmp.eq.s32.totalorder %s41, 1
      %p341 = por %p339, %p340
      %p343 = scmp.ne.s32.totalorder %s326, %s342
      %p344 = scmp.eq.s32.totalorder %s41, 0
      %p345 = por %p343, %p344
      %p346 = scmp.le.s32.totalorder 1, %s35
      %p347 = scmp.lt.s32.totalorder %s35, 3
      %p348 = pnand %p346, %p347
      %p349 = pneg %p348
      // Predicated region
      $region9: #{tpu_custom_call.1} parent=5 // pred_check
        _
      $region10: #{tpu_custom_call.1} parent=5 // pred_check_branch
        %351 = sbr.rel (%p348) target = $region12
      $region11: #{tpu_custom_call.1} parent=5 // pred_region
        %s352 = ssub.s32 %s35, 1
        // Predicated region
        $region13: #{tpu_custom_call.1} parent=11 // pred_check
          %p353 = pneg %p160
        $region14: #{tpu_custom_call.1} parent=11 // pred_check_branch
          %355 = sbr.rel (%p353) target = $region16
        $region15: #{tpu_custom_call.1} parent=11 // pred_region
          %s357 = ssub.s32 256, 256
          %358 = vsyncadd [#allocation9], %s357
          %s359 = sshll.u32 [#allocation10], 4
          %s360 = int_to_ptr.vmem [resolvable:$true] %s359
          %365 = dma.hbm_to_vmem [thread:$0]  %s4, 256, %s360, [#allocation9], 64, 64, 4
        $region16: #{tpu_custom_call.1} parent=11 // pred_fallthru
          _
        // Predicated region
        $region17: #{tpu_custom_call.1} parent=11 // pred_check
          %p366 = pneg %p181
        $region18: #{tpu_custom_call.1} parent=11 // pred_check_branch
          %368 = sbr.rel (%p366) target = $region20
        $region19: #{tpu_custom_call.1} parent=11 // pred_region
          _
        $region20: #{tpu_custom_call.1} parent=11 // pred_fallthru
          _
        // Predicated region
        $region21: #{tpu_custom_call.1} parent=11 // pred_check
          %p369 = pneg %p202
        $region22: #{tpu_custom_call.1} parent=11 // pred_check_branch
          %371 = sbr.rel (%p369) target = $region24
        $region23: #{tpu_custom_call.1} parent=11 // pred_region
          %s373 = ssub.s32 256, 256
          %374 = vsyncadd [#allocation12], %s373
          %s375 = sshll.u32 [#allocation11], 4
          %s376 = int_to_ptr.vmem [resolvable:$true] %s375
          %381 = dma.hbm_to_vmem [thread:$0]  %s6, 256, %s376, [#allocation12], 64, 64, 4
        $region24: #{tpu_custom_call.1} parent=11 // pred_fallthru
          _
        // Predicated region
        $region25: #{tpu_custom_call.1} parent=11 // pred_check
          %p382 = pneg %p223
        $region26: #{tpu_custom_call.1} parent=11 // pred_check_branch
          %384 = sbr.rel (%p382) target = $region28
        $region27: #{tpu_custom_call.1} parent=11 // pred_region
          %s386 = ssub.s32 256, 256
          %387 = vsyncadd [#allocation12], %s386
          %s388 = sshll.u32 [#allocation13], 4
          %s389 = int_to_ptr.vmem [resolvable:$true] %s388
          %394 = dma.hbm_to_vmem [thread:$0]  %s7, 256, %s389, [#allocation12], 64, 64, 4
        $region28: #{tpu_custom_call.1} parent=11 // pred_fallthru
          _
        // Predicated region
        $region29: #{tpu_custom_call.1} parent=11 // pred_check
          %p395 = pneg %p244
        $region30: #{tpu_custom_call.1} parent=11 // pred_check_branch
          %397 = sbr.rel (%p395) target = $region32
        $region31: #{tpu_custom_call.1} parent=11 // pred_region
          _
        $region32: #{tpu_custom_call.1} parent=11 // pred_fallthru
          _
        // Predicated region
        $region33: #{tpu_custom_call.1} parent=11 // pred_check
          %p398 = pneg %p265
        $region34: #{tpu_custom_call.1} parent=11 // pred_check_branch
          %400 = sbr.rel (%p398) target = $region36
        $region35: #{tpu_custom_call.1} parent=11 // pred_region
          _
        $region36: #{tpu_custom_call.1} parent=11 // pred_fallthru
          _
        // Predicated region
        $region37: #{tpu_custom_call.1} parent=11 // pred_check
          %p401 = pneg %p286
        $region38: #{tpu_custom_call.1} parent=11 // pred_check_branch
          %403 = sbr.rel (%p401) target = $region40
        $region39: #{tpu_custom_call.1} parent=11 // pred_region
          _
        $region40: #{tpu_custom_call.1} parent=11 // pred_fallthru
          _
      $region12: #{tpu_custom_call.1} parent=5 // pred_fallthru
        _
      %p404 = scmp.lt.s32.totalorder %s35, 2
      // Predicated region
      $region41: #{tpu_custom_call.1} parent=5 // pred_check
        %p405 = pneg %p404
      $region42: #{tpu_custom_call.1} parent=5 // pred_check_branch
        %407 = sbr.rel (%p405) target = $region44
      $region43: #{tpu_custom_call.1} parent=5 // pred_region
        // Predicated region
        $region45: #{tpu_custom_call.1} parent=43 // pred_check
          %p408 = pneg %p55
        $region46: #{tpu_custom_call.1} parent=43 // pred_check_branch
          %410 = sbr.rel (%p408) target = $region48
        $region47: #{tpu_custom_call.1} parent=43 // pred_region
          %s411 = sand.u32 %s45, 1
          %s412 = scalar_lea.sflag [#allocation3], %s411
          %s413 = sand.u32 %s45, 1
          %s414 = smul.addr %s413, 8
          %s415 = scalar_lea.vmem [#allocation2], %s414
          %s417 = ssub.s32 128, 128
          %418 = vsyncadd %s412, %s417
          %s419 = smul.addr %s35, 128
          %s420 = scalar_lea.hbm %s0, %s419
          %s422 = sshll.u32 %s415, 4
          %s423 = int_to_ptr.vmem [resolvable:$true] %s422
          %425 = dma.hbm_to_vmem [thread:$0]  %s420, 128, %s423, %s412
        $region48: #{tpu_custom_call.1} parent=43 // pred_fallthru
          _
        // Predicated region
        $region49: #{tpu_custom_call.1} parent=43 // pred_check
          %p426 = pneg %p81
        $region50: #{tpu_custom_call.1} parent=43 // pred_check_branch
          %428 = sbr.rel (%p426) target = $region52
        $region51: #{tpu_custom_call.1} parent=43 // pred_region
          %s429 = sand.u32 %s35, 1
          %s430 = scalar_lea.sflag [#allocation6], %s429
          %s431 = sand.u32 %s71, 1
          %s432 = smul.addr %s431, 8
          %s433 = scalar_lea.vmem [#allocation5], %s432
          %s435 = ssub.s32 128, 128
          %436 = vsyncadd %s430, %s435
          %s437 = smul.addr %s35, 128
          %s438 = scalar_lea.hbm %s1, %s437
          %s440 = sshll.u32 %s433, 4
          %s441 = int_to_ptr.vmem [resolvable:$true] %s440
          %443 = dma.hbm_to_vmem [thread:$0]  %s438, 128, %s441, %s430
        $region52: #{tpu_custom_call.1} parent=43 // pred_fallthru
          _
        // Predicated region
        $region53: #{tpu_custom_call.1} parent=43 // pred_check
          %p444 = pneg %p107
        $region54: #{tpu_custom_call.1} parent=43 // pred_check_branch
          %446 = sbr.rel (%p444) target = $region56
        $region55: #{tpu_custom_call.1} parent=43 // pred_region
          %s447 = sand.u32 %s35, 1
          %s448 = scalar_lea.sflag [#allocation6], %s447
          %s449 = sand.u32 %s97, 1
          %s450 = smul.addr %s449, 8
          %s451 = scalar_lea.vmem [#allocation7], %s450
          %s453 = ssub.s32 128, 128
          %454 = vsyncadd %s448, %s453
          %s455 = smul.addr %s35, 128
          %s456 = scalar_lea.hbm %s2, %s455
          %s458 = sshll.u32 %s451, 4
          %s459 = int_to_ptr.vmem [resolvable:$true] %s458
          %461 = dma.hbm_to_vmem [thread:$0]  %s456, 128, %s459, %s448
        $region56: #{tpu_custom_call.1} parent=43 // pred_fallthru
          _
        // Predicated region
        $region57: #{tpu_custom_call.1} parent=43 // pred_check
          %p462 = pneg %p133
        $region58: #{tpu_custom_call.1} parent=43 // pred_check_branch
          %464 = sbr.rel (%p462) target = $region60
        $region59: #{tpu_custom_call.1} parent=43 // pred_region
          %s465 = sand.u32 %s35, 1
          %s466 = scalar_lea.sflag [#allocation9], %s465
          %s467 = sand.u32 %s123, 1
          %s468 = smul.addr %s467, 8
          %s469 = scalar_lea.vmem [#allocation8], %s468
          %s471 = ssub.s32 128, 128
          %472 = vsyncadd %s466, %s471
          %s473 = smul.addr %s35, 128
          %s474 = scalar_lea.hbm %s3, %s473
          %s476 = sshll.u32 %s469, 4
          %s477 = int_to_ptr.vmem [resolvable:$true] %s476
          %479 = dma.hbm_to_vmem [thread:$0]  %s474, 128, %s477, %s466
        $region60: #{tpu_custom_call.1} parent=43 // pred_fallthru
          _
      $region44: #{tpu_custom_call.1} parent=5 // pred_fallthru
        _
      %p480 = scmp.le.s32.totalorder 1, %s35
      %p481 = scmp.lt.s32.totalorder %s35, 3
      %p482 = pnand %p480, %p481
      %p483 = pneg %p482
      // Predicated region
      $region61: #{tpu_custom_call.1} parent=5 // pred_check
        _
      $region62: #{tpu_custom_call.1} parent=5 // pred_check_branch
        %485 = sbr.rel (%p482) target = $region64
      $region63: #{tpu_custom_call.1} parent=5 // pred_region
        %s486 = ssub.s32 %s35, 1
        %s487 = sand.u32 %s48, 1
        %s488 = scalar_lea.sflag [#allocation3], %s487
        %s489 = sand.u32 %s48, 1
        %s490 = smul.addr %s489, 8
        %s491 = scalar_lea.vmem [#allocation2], %s490
        // Predicated region
        $region65: #{tpu_custom_call.1} parent=63 // pred_check
          %p492 = pneg %p61
        $region66: #{tpu_custom_call.1} parent=63 // pred_check_branch
          %494 = sbr.rel (%p492) target = $region68
        $region67: #{tpu_custom_call.1} parent=63 // pred_region
          %495 = dma.done %s488, 128
        $region68: #{tpu_custom_call.1} parent=63 // pred_fallthru
          _
        %s496 = sand.u32 %s40, 1
        %s497 = scalar_lea.sflag [#allocation6], %s496
        %s498 = sand.u32 %s74, 1
        %s499 = smul.addr %s498, 8
        %s500 = scalar_lea.vmem [#allocation5], %s499
        // Predicated region
        $region69: #{tpu_custom_call.1} parent=63 // pred_check
          %p501 = pneg %p87
        $region70: #{tpu_custom_call.1} parent=63 // pred_check_branch
          %503 = sbr.rel (%p501) target = $region72
        $region71: #{tpu_custom_call.1} parent=63 // pred_region
          %504 = dma.done %s497, 128
        $region72: #{tpu_custom_call.1} parent=63 // pred_fallthru
          _
        %s505 = sand.u32 %s40, 1
        %s506 = scalar_lea.sflag [#allocation6], %s505
        %s507 = sand.u32 %s100, 1
        %s508 = smul.addr %s507, 8
        %s509 = scalar_lea.vmem [#allocation7], %s508
        // Predicated region
        $region73: #{tpu_custom_call.1} parent=63 // pred_check
          %p510 = pneg %p113
        $region74: #{tpu_custom_call.1} parent=63 // pred_check_branch
          %512 = sbr.rel (%p510) target = $region76
        $region75: #{tpu_custom_call.1} parent=63 // pred_region
          %513 = dma.done %s506, 128
        $region76: #{tpu_custom_call.1} parent=63 // pred_fallthru
          _
        %s514 = sand.u32 %s40, 1
        %s515 = scalar_lea.sflag [#allocation9], %s514
        %s516 = sand.u32 %s126, 1
        %s517 = smul.addr %s516, 8
        %s518 = scalar_lea.vmem [#allocation8], %s517
        // Predicated region
        $region77: #{tpu_custom_call.1} parent=63 // pred_check
          %p519 = pneg %p139
        $region78: #{tpu_custom_call.1} parent=63 // pred_check_branch
          %521 = sbr.rel (%p519) target = $region80
        $region79: #{tpu_custom_call.1} parent=63 // pred_region
          %522 = dma.done %s515, 128
        $region80: #{tpu_custom_call.1} parent=63 // pred_fallthru
          _
        // Predicated region
        $region81: #{tpu_custom_call.1} parent=63 // pred_check
          %p523 = pneg %p160
        $region82: #{tpu_custom_call.1} parent=63 // pred_check_branch
          %525 = sbr.rel (%p523) target = $region84
        $region83: #{tpu_custom_call.1} parent=63 // pred_region
          %526 = dma.done [#allocation9], 256
        $region84: #{tpu_custom_call.1} parent=63 // pred_fallthru
          _
        // Predicated region
        $region85: #{tpu_custom_call.1} parent=63 // pred_check
          %p527 = pneg %p202
        $region86: #{tpu_custom_call.1} parent=63 // pred_check_branch
          %529 = sbr.rel (%p527) target = $region88
        $region87: #{tpu_custom_call.1} parent=63 // pred_region
          %530 = dma.done [#allocation12], 256
        $region88: #{tpu_custom_call.1} parent=63 // pred_fallthru
          _
        // Predicated region
        $region89: #{tpu_custom_call.1} parent=63 // pred_check
          %p531 = pneg %p223
        $region90: #{tpu_custom_call.1} parent=63 // pred_check_branch
          %533 = sbr.rel (%p531) target = $region92
        $region91: #{tpu_custom_call.1} parent=63 // pred_region
          %534 = dma.done [#allocation12], 256
        $region92: #{tpu_custom_call.1} parent=63 // pred_fallthru
          _
        %s535 = sand.u32 %s48, 1
        %s536 = scalar_lea.sflag [#allocation3], %s535
        %s537 = sand.u32 %s48, 1
        %s538 = smul.addr %s537, 8
        %s539 = scalar_lea.vmem [#allocation2], %s538
        %p540 = pneg %p61
        %p541 = pneg %p58
        %s542 = sand.u32 %s40, 1
        %s543 = scalar_lea.sflag [#allocation6], %s542
        %s544 = sand.u32 %s74, 1
        %s545 = smul.addr %s544, 8
        %s546 = scalar_lea.vmem [#allocation5], %s545
        %p547 = pneg %p87
        %p548 = pneg %p84
        %s549 = sand.u32 %s40, 1
        %s550 = scalar_lea.sflag [#allocation6], %s549
        %s551 = sand.u32 %s100, 1
        %s552 = smul.addr %s551, 8
        %s553 = scalar_lea.vmem [#allocation7], %s552
        %p554 = pneg %p113
        %p555 = pneg %p110
        %s556 = sand.u32 %s40, 1
        %s557 = scalar_lea.sflag [#allocation9], %s556
        %s558 = sand.u32 %s126, 1
        %s559 = smul.addr %s558, 8
        %s560 = scalar_lea.vmem [#allocation8], %s559
        %p561 = pneg %p139
        %p562 = pneg %p136
        %p563 = pneg %p160
        %p564 = pneg %p157
        %p565 = pneg %p181
        %p566 = pneg %p178
        %p567 = pneg %p202
        %p568 = pneg %p199
        %p569 = pneg %p223
        %p570 = pneg %p220
        %p571 = pneg %p244
        %p572 = pneg %p241
        %p573 = pneg %p265
        %p574 = pneg %p262
        %p575 = pneg %p286
        %p576 = pneg %p283
        %p577 = pneg %p312
        %p578 = pneg %p309
        %s579 = sand.u32 %s299, 1
        %s580 = scalar_lea.sflag [#allocation4], %s579
        %s581 = sand.u32 %s299, 1
        %s582 = smul.addr %s581, 8
        %s583 = scalar_lea.vmem [#allocation14], %s582
        %p584 = pneg %p338
        %p585 = pneg %p335
        %s586 = sand.u32 %s325, 1
        %s587 = scalar_lea.sflag [#allocation16], %s586
        %s588 = sand.u32 %s325, 1
        %s589 = smul.addr %s588, 32
        %s590 = scalar_lea.vmem [#allocation15], %s589
        %v592 = vld [vmem:[%s491] sm:$0xff]
        %v593 = vpack.c.bf16 %v592, %v592
        %v594 = vld [vmem:[%s500] sm:$0xff]
        %v595 = vpack.c.bf16 %v594, %v594
        %v596 = vld [vmem:[%s509] sm:$0xff]
        %v597 = vpack.c.bf16 %v596, %v596
        %v598 = vld [vmem:[%s518] sm:$0xff]
        %v599 = vld [vmem:[#allocation10] sm:$0xf]
        %v600 = vld [vmem:[#allocation10 + $0x4] sm:$0xf]
        %v601 = vld [vmem:[#allocation10 + $0x8] sm:$0xf]
        %v602 = vld [vmem:[#allocation10 + $0xc] sm:$0xf]
        %v607 = vunpack.c.l.b16 %v599
        %v608 = vunpack.c.l.b16 %v600
        %v609 = vunpack.c.l.b16 %v601
        %v610 = vunpack.c.l.b16 %v602
        %v611 = vpack.c.b16 %v608, %v607
        %v612 = vpack.c.b16 %v610, %v609
        %vm615 = vcmask 261120
        %v617 = vsel %vm615, %v593, 0
        %619 = vmatprep.subr.bf16.mxu0 0
        %620 = vmatpush1.bf16.msra.mxu0 %v611
        %621 = vmatprep.subr.bf16.mxu0 0
        %622 = vmatpush1.bf16.msra.mxu0 %v612
        %623 = vmatprep.subr.bf16.mxu0 0
        %624 = vmatpush1.bf16.msra.mxu0 0
        %625 = vmatprep.subr.bf16.mxu0 0
        %626 = vmatpush1.bf16.msra.mxu0 0
        %627 = vmatprep.subr.bf16.mxu0 0
        %628 = vmatpush1.bf16.msra.mxu0 0
        %629 = vmatprep.subr.bf16.mxu0 0
        %630 = vmatpush1.bf16.msra.mxu0 0
        %631 = vmatprep.subr.bf16.mxu0 0
        %632 = vmatpush1.bf16.msra.mxu0 0
        %633 = vmatprep.subr.bf16.mxu0 0
        %634 = vmatpush1.bf16.msra.mxu0 0
        %635 = vmatprep.subr.bf16.mxu0 0
        %636 = vmatpush1.bf16.msra.mxu0 0
        %637 = vmatprep.subr.bf16.mxu0 0
        %638 = vmatpush1.bf16.msra.mxu0 0
        %639 = vmatprep.subr.bf16.mxu0 0
        %640 = vmatpush1.bf16.msra.mxu0 0
        %641 = vmatprep.subr.bf16.mxu0 0
        %642 = vmatpush1.bf16.msra.mxu0 0
        %643 = vmatprep.subr.bf16.mxu0 0
        %644 = vmatpush1.bf16.msra.mxu0 0
        %645 = vmatprep.subr.bf16.mxu0 0
        %646 = vmatpush1.bf16.msra.mxu0 0
        %647 = vmatprep.subr.bf16.mxu0 0
        %648 = vmatpush1.bf16.msra.mxu0 0
        %649 = vmatprep.subr.bf16.mxu0 0
        %650 = vmatpush1.bf16.msra.mxu0 0
        %651 = vmatprep.mubr.bf16.mxu0 0
        %652 = vmatmul.mubr.bf16.gmra.mrb[0].mxu0 %v617
        %v653 = vpop.f32.mrb[0].mxu0
        %v654 = vadd.f32 0.0, %v653
        %v655 = vpop.f32.mrb[0].mxu0
        %v656 = vpop.f32.mrb[0].mxu0
        %v657 = vpop.f32.mrb[0].mxu0
        %658 = vdwg.mxu0
        %v659 = vld [vmem:[%s5] sm:$0xf]
        %v660 = vld [vmem:[%s5 + $0x4] sm:$0xf]
        %v661 = vld [vmem:[%s5 + $0x8] sm:$0xf]
        %v662 = vld [vmem:[%s5 + $0xc] sm:$0xf]
        %v667 = vunpack.c.l.b16 %v659
        %v668 = vunpack.c.l.b16 %v660
        %v669 = vunpack.c.l.b16 %v661
        %v670 = vunpack.c.l.b16 %v662
        %v671 = vpack.c.b16 %v668, %v667
        %v672 = vpack.c.b16 %v670, %v669
        %v676 = vsel %vm615, %v595, 0
        %678 = vmatprep.subr.bf16.mxu0 0
        %679 = vmatpush1.bf16.msra.mxu0 %v671
        %680 = vmatprep.subr.bf16.mxu0 0
        %681 = vmatpush1.bf16.msra.mxu0 %v672
        %682 = vmatprep.subr.bf16.mxu0 0
        %683 = vmatpush1.bf16.msra.mxu0 0
        %684 = vmatprep.subr.bf16.mxu0 0
        %685 = vmatpush1.bf16.msra.mxu0 0
        %686 = vmatprep.subr.bf16.mxu0 0
        %687 = vmatpush1.bf16.msra.mxu0 0
        %688 = vmatprep.subr.bf16.mxu0 0
        %689 = vmatpush1.bf16.msra.mxu0 0
        %690 = vmatprep.subr.bf16.mxu0 0
        %691 = vmatpush1.bf16.msra.mxu0 0
        %692 = vmatprep.subr.bf16.mxu0 0
        %693 = vmatpush1.bf16.msra.mxu0 0
        %694 = vmatprep.subr.bf16.mxu0 0
        %695 = vmatpush1.bf16.msra.mxu0 0
        %696 = vmatprep.subr.bf16.mxu0 0
        %697 = vmatpush1.bf16.msra.mxu0 0
        %698 = vmatprep.subr.bf16.mxu0 0
        %699 = vmatpush1.bf16.msra.mxu0 0
        %700 = vmatprep.subr.bf16.mxu0 0
        %701 = vmatpush1.bf16.msra.mxu0 0
        %702 = vmatprep.subr.bf16.mxu0 0
        %703 = vmatpush1.bf16.msra.mxu0 0
        %704 = vmatprep.subr.bf16.mxu0 0
        %705 = vmatpush1.bf16.msra.mxu0 0
        %706 = vmatprep.subr.bf16.mxu0 0
        %707 = vmatpush1.bf16.msra.mxu0 0
        %708 = vmatprep.subr.bf16.mxu0 0
        %709 = vmatpush1.bf16.msra.mxu0 0
        %710 = vmatprep.mubr.bf16.mxu0 0
        %711 = vmatmul.mubr.bf16.gmra.mrb[0].mxu0 %v676
        %v712 = vpop.f32.mrb[0].mxu0
        %v713 = vadd.f32 0.0, %v712
        %v714 = vpop.f32.mrb[0].mxu0
        %v715 = vpop.f32.mrb[0].mxu0
        %v716 = vpop.f32.mrb[0].mxu0
        %717 = vdwg.mxu0
        %v718 = vld [vmem:[#allocation11] sm:$0xf]
        %v719 = vld [vmem:[#allocation11 + $0x4] sm:$0xf]
        %v720 = vld [vmem:[#allocation11 + $0x8] sm:$0xf]
        %v721 = vld [vmem:[#allocation11 + $0xc] sm:$0xf]
        %v726 = vunpack.c.l.b16 %v718
        %v727 = vunpack.c.l.b16 %v719
        %v728 = vunpack.c.l.b16 %v720
        %v729 = vunpack.c.l.b16 %v721
        %v730 = vpack.c.b16 %v727, %v726
        %v731 = vpack.c.b16 %v729, %v728
        %v735 = vsel %vm615, %v597, 0
        %737 = vmatprep.subr.bf16.mxu0 0
        %738 = vmatpush1.bf16.msra.mxu0 %v730
        %739 = vmatprep.subr.bf16.mxu0 0
        %740 = vmatpush1.bf16.msra.mxu0 %v731
        %741 = vmatprep.subr.bf16.mxu0 0
        %742 = vmatpush1.bf16.msra.mxu0 0
        %743 = vmatprep.subr.bf16.mxu0 0
        %744 = vmatpush1.bf16.msra.mxu0 0
        %745 = vmatprep.subr.bf16.mxu0 0
        %746 = vmatpush1.bf16.msra.mxu0 0
        %747 = vmatprep.subr.bf16.mxu0 0
        %748 = vmatpush1.bf16.msra.mxu0 0
        %749 = vmatprep.subr.bf16.mxu0 0
        %750 = vmatpush1.bf16.msra.mxu0 0
        %751 = vmatprep.subr.bf16.mxu0 0
        %752 = vmatpush1.bf16.msra.mxu0 0
        %753 = vmatprep.subr.bf16.mxu0 0
        %754 = vmatpush1.bf16.msra.mxu0 0
        %755 = vmatprep.subr.bf16.mxu0 0
        %756 = vmatpush1.bf16.msra.mxu0 0
        %757 = vmatprep.subr.bf16.mxu0 0
        %758 = vmatpush1.bf16.msra.mxu0 0
        %759 = vmatprep.subr.bf16.mxu0 0
        %760 = vmatpush1.bf16.msra.mxu0 0
        %761 = vmatprep.subr.bf16.mxu0 0
        %762 = vmatpush1.bf16.msra.mxu0 0
        %763 = vmatprep.subr.bf16.mxu0 0
        %764 = vmatpush1.bf16.msra.mxu0 0
        %765 = vmatprep.subr.bf16.mxu0 0
        %766 = vmatpush1.bf16.msra.mxu0 0
        %767 = vmatprep.subr.bf16.mxu0 0
        %768 = vmatpush1.bf16.msra.mxu0 0
        %769 = vmatprep.mubr.bf16.mxu0 0
        %770 = vmatmul.mubr.bf16.gmra.mrb[0].mxu0 %v735
        %v771 = vpop.f32.mrb[0].mxu0
        %v772 = vadd.f32 0.0, %v771
        %v773 = vpop.f32.mrb[0].mxu0
        %v774 = vpop.f32.mrb[0].mxu0
        %v775 = vpop.f32.mrb[0].mxu0
        %776 = vdwg.mxu0
        %v777 = vpack.c.bf16 %v654, %v654
        %v778 = vpack.c.bf16 %v713, %v713
        %v779 = vpack.c.bf16 %v772, %v772
        %vm780 = vcmask 64512
        %v782 = vsel %vm780, %v777, 0
        %v785 = vsel %vm780, %v778, 0
        %787 = vmatprep.subr.bf16.mxu0 0
        %788 = vmatpush1.bf16.xpose.msra.mxu0 %v785
        %789 = vmatprep.subr.bf16.mxu0 0
        %790 = vmatpush1.bf16.xpose.msra.mxu0 0
        %791 = vmatprep.subr.bf16.mxu0 0
        %792 = vmatpush1.bf16.xpose.msra.mxu0 0
        %793 = vmatprep.subr.bf16.mxu0 0
        %794 = vmatpush1.bf16.xpose.msra.mxu0 0
        %795 = vmatprep.subr.bf16.mxu0 0
        %796 = vmatpush1.bf16.xpose.msra.mxu0 0
        %797 = vmatprep.subr.bf16.mxu0 0
        %798 = vmatpush1.bf16.xpose.msra.mxu0 0
        %799 = vmatprep.subr.bf16.mxu0 0
        %800 = vmatpush1.bf16.xpose.msra.mxu0 0
        %801 = vmatprep.subr.bf16.mxu0 0
        %802 = vmatpush1.bf16.xpose.msra.mxu0 0
        %803 = vmatprep.subr.bf16.mxu0 0
        %804 = vmatpush1.bf16.xpose.msra.mxu0 0
        %805 = vmatprep.subr.bf16.mxu0 0
        %806 = vmatpush1.bf16.xpose.msra.mxu0 0
        %807 = vmatprep.subr.bf16.mxu0 0
        %808 = vmatpush1.bf16.xpose.msra.mxu0 0
        %809 = vmatprep.subr.bf16.mxu0 0
        %810 = vmatpush1.bf16.xpose.msra.mxu0 0
        %811 = vmatprep.subr.bf16.mxu0 0
        %812 = vmatpush1.bf16.xpose.msra.mxu0 0
        %813 = vmatprep.subr.bf16.mxu0 0
        %814 = vmatpush1.bf16.xpose.msra.mxu0 0
        %815 = vmatprep.subr.bf16.mxu0 0
        %816 = vmatpush1.bf16.xpose.msra.mxu0 0
        %817 = vmatprep.subr.bf16.mxu0 0
        %818 = vmatpush1.bf16.xpose.msra.mxu0 0
        %819 = vmatprep.mubr.bf16.mxu0 0
        %820 = vmatmul.mubr.bf16.gmra.mrb[0].mxu0 %v782
        %v821 = vpop.f32.mrb[0].mxu0
        %v822 = vadd.f32 0.0, %v821
        %v823 = vpop.f32.mrb[0].mxu0
        %v824 = vpop.f32.mrb[0].mxu0
        %v825 = vpop.f32.mrb[0].mxu0
        %826 = vdwg.mxu0
        %828 = vrot.lane.b32.xlu0 %v777, 96
        %v829 = vpop.permute.xlu0 %828
        %831 = vrot.lane.b32.xlu0 %v778, 96
        %v832 = vpop.permute.xlu0 %831
        %v834 = vsel %vm780, %v829, 0
        %v837 = vsel %vm780, %v832, 0
        %839 = vmatprep.subr.bf16.mxu0 0
        %840 = vmatpush1.bf16.xpose.msra.mxu0 %v837
        %841 = vmatprep.subr.bf16.mxu0 0
        %842 = vmatpush1.bf16.xpose.msra.mxu0 0
        %843 = vmatprep.subr.bf16.mxu0 0
        %844 = vmatpush1.bf16.xpose.msra.mxu0 0
        %845 = vmatprep.subr.bf16.mxu0 0
        %846 = vmatpush1.bf16.xpose.msra.mxu0 0
        %847 = vmatprep.subr.bf16.mxu0 0
        %848 = vmatpush1.bf16.xpose.msra.mxu0 0
        %849 = vmatprep.subr.bf16.mxu0 0
        %850 = vmatpush1.bf16.xpose.msra.mxu0 0
        %851 = vmatprep.subr.bf16.mxu0 0
        %852 = vmatpush1.bf16.xpose.msra.mxu0 0
        %853 = vmatprep.subr.bf16.mxu0 0
        %854 = vmatpush1.bf16.xpose.msra.mxu0 0
        %855 = vmatprep.subr.bf16.mxu0 0
        %856 = vmatpush1.bf16.xpose.msra.mxu0 0
        %857 = vmatprep.subr.bf16.mxu0 0
        %858 = vmatpush1.bf16.xpose.msra.mxu0 0
        %859 = vmatprep.subr.bf16.mxu0 0
        %860 = vmatpush1.bf16.xpose.msra.mxu0 0
        %861 = vmatprep.subr.bf16.mxu0 0
        %862 = vmatpush1.bf16.xpose.msra.mxu0 0
        %863 = vmatprep.subr.bf16.mxu0 0
        %864 = vmatpush1.bf16.xpose.msra.mxu0 0
        %865 = vmatprep.subr.bf16.mxu0 0
        %866 = vmatpush1.bf16.xpose.msra.mxu0 0
        %867 = vmatprep.subr.bf16.mxu0 0
        %868 = vmatpush1.bf16.xpose.msra.mxu0 0
        %869 = vmatprep.subr.bf16.mxu0 0
        %870 = vmatpush1.bf16.xpose.msra.mxu0 0
        %871 = vmatprep.mubr.bf16.mxu0 0
        %872 = vmatmul.mubr.bf16.gmra.mrb[0].mxu0 %v834
        %v873 = vpop.f32.mrb[0].mxu0
        %v874 = vadd.f32 0.0, %v873
        %v875 = vpop.f32.mrb[0].mxu0
        %v876 = vpop.f32.mrb[0].mxu0
        %v877 = vpop.f32.mrb[0].mxu0
        %878 = vdwg.mxu0
        %879 = vrot.lane.b32.xlu0 %v777, 64
        %v880 = vpop.permute.xlu0 %879
        %v882 = vsel %vm780, %v880, 0
        %v885 = vsel %vm780, %v779, 0
        %887 = vmatprep.subr.bf16.mxu0 0
        %888 = vmatpush1.bf16.xpose.msra.mxu0 %v885
        %889 = vmatprep.subr.bf16.mxu0 0
        %890 = vmatpush1.bf16.xpose.msra.mxu0 0
        %891 = vmatprep.subr.bf16.mxu0 0
        %892 = vmatpush1.bf16.xpose.msra.mxu0 0
        %893 = vmatprep.subr.bf16.mxu0 0
        %894 = vmatpush1.bf16.xpose.msra.mxu0 0
        %895 = vmatprep.subr.bf16.mxu0 0
        %896 = vmatpush1.bf16.xpose.msra.mxu0 0
        %897 = vmatprep.subr.bf16.mxu0 0
        %898 = vmatpush1.bf16.xpose.msra.mxu0 0
        %899 = vmatprep.subr.bf16.mxu0 0
        %900 = vmatpush1.bf16.xpose.msra.mxu0 0
        %901 = vmatprep.subr.bf16.mxu0 0
        %902 = vmatpush1.bf16.xpose.msra.mxu0 0
        %903 = vmatprep.subr.bf16.mxu0 0
        %904 = vmatpush1.bf16.xpose.msra.mxu0 0
        %905 = vmatprep.subr.bf16.mxu0 0
        %906 = vmatpush1.bf16.xpose.msra.mxu0 0
        %907 = vmatprep.subr.bf16.mxu0 0
        %908 = vmatpush1.bf16.xpose.msra.mxu0 0
        %909 = vmatprep.subr.bf16.mxu0 0
        %910 = vmatpush1.bf16.xpose.msra.mxu0 0
        %911 = vmatprep.subr.bf16.mxu0 0
        %912 = vmatpush1.bf16.xpose.msra.mxu0 0
        %913 = vmatprep.subr.bf16.mxu0 0
        %914 = vmatpush1.bf16.xpose.msra.mxu0 0
        %915 = vmatprep.subr.bf16.mxu0 0
        %916 = vmatpush1.bf16.xpose.msra.mxu0 0
        %917 = vmatprep.subr.bf16.mxu0 0
        %918 = vmatpush1.bf16.xpose.msra.mxu0 0
        %919 = vmatprep.mubr.bf16.mxu0 0
        %920 = vmatmul.mubr.bf16.gmra.mrb[0].mxu0 %v882
        %v921 = vpop.f32.mrb[0].mxu0
        %v922 = vadd.f32 0.0, %v921
        %v923 = vpop.f32.mrb[0].mxu0
        %v924 = vpop.f32.mrb[0].mxu0
        %v925 = vpop.f32.mrb[0].mxu0
        %926 = vdwg.mxu0
        %vm927 = vcmp.gt.f32.partialorder %v598, 0.5
        %v928 = vsel %vm927, %v822, %v874
        %v929 = vsel %vm780, %v928, -inf
        %930 = vmax.xlane.f32.xlu0 %v929
        %v931 = vpop.xlane.xlu0 %930
        %v932 = vsel %vm780, %v922, -inf
        %933 = vmax.xlane.f32.xlu0 %v932
        %v934 = vpop.xlane.xlu0 %933
        %v935 = vmax.f32 %v931, %v934
        %v936 = vsub.f32 %v928, %v935
        %v937 = vmul.f32 %v936, 1.442695
        %v938 = vpow.pop %v937
        %v939 = vsub.f32 %v922, %v935
        %v940 = vmul.f32 %v939, 1.442695
        %v941 = vpow.pop %v940
        %v942 = vsel %vm780, %v938, 0.0
        %943 = vadd.xlane.f32.xlu0 %v942
        %v944 = vpop.xlane.xlu0 %943
        %v945 = vsel %vm780, %v941, 0.0
        %946 = vadd.xlane.f32.xlu0 %v945
        %v947 = vpop.xlane.xlu0 %946
        %v948 = vadd.f32 %v944, %v947
        %v949 = vrcp.pop %v948
        %951 = vrot.lane.b32.xlu0 %v941, 8
        %v952 = vpop.permute.xlu0 %951
        %v954 = vsel %vm780, %v938, %v952
        %v955 = vmul.f32 %v954, %v949
        %vm956 = vcmask 130048
        %957 = vst.msk [vmem:[%s590] sm:$0xff] %vm956, %v955
        %v958 = vpack.c.bf16 %v938, %v938
        %v959 = vpack.c.bf16 %v941, %v941
        %961 = vrot.lane.b32.xlu0 %v779, 96
        %v962 = vpop.permute.xlu0 %961
        %v964 = vsel %vm780, %v959, 0
        %vm966 = vcmask 1043456
        %v968 = vsel %vm966, %v962, 0
        %970 = vmatprep.subr.bf16.mxu0 0
        %971 = vmatpush1.bf16.msra.mxu0 %v968
        %972 = vmatprep.subr.bf16.mxu0 0
        %973 = vmatpush1.bf16.msra.mxu0 0
        %974 = vmatprep.subr.bf16.mxu0 0
        %975 = vmatpush1.bf16.msra.mxu0 0
        %976 = vmatprep.subr.bf16.mxu0 0
        %977 = vmatpush1.bf16.msra.mxu0 0
        %978 = vmatprep.subr.bf16.mxu0 0
        %979 = vmatpush1.bf16.msra.mxu0 0
        %980 = vmatprep.subr.bf16.mxu0 0
        %981 = vmatpush1.bf16.msra.mxu0 0
        %982 = vmatprep.subr.bf16.mxu0 0
        %983 = vmatpush1.bf16.msra.mxu0 0
        %984 = vmatprep.subr.bf16.mxu0 0
        %985 = vmatpush1.bf16.msra.mxu0 0
        %986 = vmatprep.subr.bf16.mxu0 0
        %987 = vmatpush1.bf16.msra.mxu0 0
        %988 = vmatprep.subr.bf16.mxu0 0
        %989 = vmatpush1.bf16.msra.mxu0 0
        %990 = vmatprep.subr.bf16.mxu0 0
        %991 = vmatpush1.bf16.msra.mxu0 0
        %992 = vmatprep.subr.bf16.mxu0 0
        %993 = vmatpush1.bf16.msra.mxu0 0
        %994 = vmatprep.subr.bf16.mxu0 0
        %995 = vmatpush1.bf16.msra.mxu0 0
        %996 = vmatprep.subr.bf16.mxu0 0
        %997 = vmatpush1.bf16.msra.mxu0 0
        %998 = vmatprep.subr.bf16.mxu0 0
        %999 = vmatpush1.bf16.msra.mxu0 0
        %1000 = vmatprep.subr.bf16.mxu0 0
        %1001 = vmatpush1.bf16.msra.mxu0 0
        %1002 = vmatprep.mubr.bf16.mxu0 0
        %1003 = vmatmul.mubr.bf16.gmra.mrb[0].mxu0 %v964
        %v1004 = vpop.f32.mrb[0].mxu0
        %v1005 = vadd.f32 0.0, %v1004
        %v1006 = vpop.f32.mrb[0].mxu0
        %v1007 = vpop.f32.mrb[0].mxu0
        %v1008 = vpop.f32.mrb[0].mxu0
        %1009 = vdwg.mxu0
        %1010 = vrot.lane.b32.xlu0 %v778, 64
        %v1011 = vpop.permute.xlu0 %1010
        %v1013 = vsel %vm780, %v958, 0
        %v1016 = vsel %vm966, %v1011, 0
        %1018 = vmatprep.subr.bf16.mxu0 0
        %1019 = vmatpush1.bf16.msra.mxu0 %v1016
        %1020 = vmatprep.subr.bf16.mxu0 0
        %1021 = vmatpush1.bf16.msra.mxu0 0
        %1022 = vmatprep.subr.bf16.mxu0 0
        %1023 = vmatpush1.bf16.msra.mxu0 0
        %1024 = vmatprep.subr.bf16.mxu0 0
        %1025 = vmatpush1.bf16.msra.mxu0 0
        %1026 = vmatprep.subr.bf16.mxu0 0
        %1027 = vmatpush1.bf16.msra.mxu0 0
        %1028 = vmatprep.subr.bf16.mxu0 0
        %1029 = vmatpush1.bf16.msra.mxu0 0
        %1030 = vmatprep.subr.bf16.mxu0 0
        %1031 = vmatpush1.bf16.msra.mxu0 0
        %1032 = vmatprep.subr.bf16.mxu0 0
        %1033 = vmatpush1.bf16.msra.mxu0 0
        %1034 = vmatprep.subr.bf16.mxu0 0
        %1035 = vmatpush1.bf16.msra.mxu0 0
        %1036 = vmatprep.subr.bf16.mxu0 0
        %1037 = vmatpush1.bf16.msra.mxu0 0
        %1038 = vmatprep.subr.bf16.mxu0 0
        %1039 = vmatpush1.bf16.msra.mxu0 0
        %1040 = vmatprep.subr.bf16.mxu0 0
        %1041 = vmatpush1.bf16.msra.mxu0 0
        %1042 = vmatprep.subr.bf16.mxu0 0
        %1043 = vmatpush1.bf16.msra.mxu0 0
        %1044 = vmatprep.subr.bf16.mxu0 0
        %1045 = vmatpush1.bf16.msra.mxu0 0
        %1046 = vmatprep.subr.bf16.mxu0 0
        %1047 = vmatpush1.bf16.msra.mxu0 0
        %1048 = vmatprep.subr.bf16.mxu0 0
        %1049 = vmatpush1.bf16.msra.mxu0 0
        %1050 = vmatprep.mubr.bf16.mxu0 0
        %1051 = vmatmul.mubr.bf16.gmra.mrb[0].mxu0 %v1013
        %v1052 = vpop.f32.mrb[0].mxu0
        %v1053 = vadd.f32 %v1005, %v1052
        %v1054 = vpop.f32.mrb[0].mxu0
        %v1055 = vpop.f32.mrb[0].mxu0
        %v1056 = vpop.f32.mrb[0].mxu0
        %1057 = vdwg.mxu0
        %v1058 = vmul.f32 %v1053, %v949
        %1059 = vrot.lane.b32.xlu0 %v777, 120
        %v1060 = vpop.permute.xlu0 %1059
        %1061 = vrot.lane.b32.xlu0 %v778, 120
        %v1062 = vpop.permute.xlu0 %1061
        %v1064 = vsel %vm780, %v1060, 0
        %v1067 = vsel %vm780, %v1062, 0
        %1069 = vmatprep.subr.bf16.mxu0 0
        %1070 = vmatpush1.bf16.xpose.msra.mxu0 %v1067
        %1071 = vmatprep.subr.bf16.mxu0 0
        %1072 = vmatpush1.bf16.xpose.msra.mxu0 0
        %1073 = vmatprep.subr.bf16.mxu0 0
        %1074 = vmatpush1.bf16.xpose.msra.mxu0 0
        %1075 = vmatprep.subr.bf16.mxu0 0
        %1076 = vmatpush1.bf16.xpose.msra.mxu0 0
        %1077 = vmatprep.subr.bf16.mxu0 0
        %1078 = vmatpush1.bf16.xpose.msra.mxu0 0
        %1079 = vmatprep.subr.bf16.mxu0 0
        %1080 = vmatpush1.bf16.xpose.msra.mxu0 0
        %1081 = vmatprep.subr.bf16.mxu0 0
        %1082 = vmatpush1.bf16.xpose.msra.mxu0 0
        %1083 = vmatprep.subr.bf16.mxu0 0
        %1084 = vmatpush1.bf16.xpose.msra.mxu0 0
        %1085 = vmatprep.subr.bf16.mxu0 0
        %1086 = vmatpush1.bf16.xpose.msra.mxu0 0
        %1087 = vmatprep.subr.bf16.mxu0 0
        %1088 = vmatpush1.bf16.xpose.msra.mxu0 0
        %1089 = vmatprep.subr.bf16.mxu0 0
        %1090 = vmatpush1.bf16.xpose.msra.mxu0 0
        %1091 = vmatprep.subr.bf16.mxu0 0
        %1092 = vmatpush1.bf16.xpose.msra.mxu0 0
        %1093 = vmatprep.subr.bf16.mxu0 0
        %1094 = vmatpush1.bf16.xpose.msra.mxu0 0
        %1095 = vmatprep.subr.bf16.mxu0 0
        %1096 = vmatpush1.bf16.xpose.msra.mxu0 0
        %1097 = vmatprep.subr.bf16.mxu0 0
        %1098 = vmatpush1.bf16.xpose.msra.mxu0 0
        %1099 = vmatprep.subr.bf16.mxu0 0
        %1100 = vmatpush1.bf16.xpose.msra.mxu0 0
        %1101 = vmatprep.mubr.bf16.mxu0 0
        %1102 = vmatmul.mubr.bf16.gmra.mrb[0].mxu0 %v1064
        %v1103 = vpop.f32.mrb[0].mxu0
        %v1104 = vadd.f32 0.0, %v1103
        %v1105 = vpop.f32.mrb[0].mxu0
        %v1106 = vpop.f32.mrb[0].mxu0
        %v1107 = vpop.f32.mrb[0].mxu0
        %1108 = vdwg.mxu0
        %1109 = vrot.lane.b32.xlu0 %v777, 88
        %v1110 = vpop.permute.xlu0 %1109
        %1111 = vrot.lane.b32.xlu0 %v778, 88
        %v1112 = vpop.permute.xlu0 %1111
        %v1114 = vsel %vm780, %v1110, 0
        %v1117 = vsel %vm780, %v1112, 0
        %1119 = vmatprep.subr.bf16.mxu0 0
        %1120 = vmatpush1.bf16.xpose.msra.mxu0 %v1117
        %1121 = vmatprep.subr.bf16.mxu0 0
        %1122 = vmatpush1.bf16.xpose.msra.mxu0 0
        %1123 = vmatprep.subr.bf16.mxu0 0
        %1124 = vmatpush1.bf16.xpose.msra.mxu0 0
        %1125 = vmatprep.subr.bf16.mxu0 0
        %1126 = vmatpush1.bf16.xpose.msra.mxu0 0
        %1127 = vmatprep.subr.bf16.mxu0 0
        %1128 = vmatpush1.bf16.xpose.msra.mxu0 0
        %1129 = vmatprep.subr.bf16.mxu0 0
        %1130 = vmatpush1.bf16.xpose.msra.mxu0 0
        %1131 = vmatprep.subr.bf16.mxu0 0
        %1132 = vmatpush1.bf16.xpose.msra.mxu0 0
        %1133 = vmatprep.subr.bf16.mxu0 0
        %1134 = vmatpush1.bf16.xpose.msra.mxu0 0
        %1135 = vmatprep.subr.bf16.mxu0 0
        %1136 = vmatpush1.bf16.xpose.msra.mxu0 0
        %1137 = vmatprep.subr.bf16.mxu0 0
        %1138 = vmatpush1.bf16.xpose.msra.mxu0 0
        %1139 = vmatprep.subr.bf16.mxu0 0
        %1140 = vmatpush1.bf16.xpose.msra.mxu0 0
        %1141 = vmatprep.subr.bf16.mxu0 0
        %1142 = vmatpush1.bf16.xpose.msra.mxu0 0
        %1143 = vmatprep.subr.bf16.mxu0 0
        %1144 = vmatpush1.bf16.xpose.msra.mxu0 0
        %1145 = vmatprep.subr.bf16.mxu0 0
        %1146 = vmatpush1.bf16.xpose.msra.mxu0 0
        %1147 = vmatprep.subr.bf16.mxu0 0
        %1148 = vmatpush1.bf16.xpose.msra.mxu0 0
        %1149 = vmatprep.subr.bf16.mxu0 0
        %1150 = vmatpush1.bf16.xpose.msra.mxu0 0
        %1151 = vmatprep.mubr.bf16.mxu0 0
        %1152 = vmatmul.mubr.bf16.gmra.mrb[0].mxu0 %v1114
        %v1153 = vpop.f32.mrb[0].mxu0
        %v1154 = vadd.f32 0.0, %v1153
        %v1155 = vpop.f32.mrb[0].mxu0
        %v1156 = vpop.f32.mrb[0].mxu0
        %v1157 = vpop.f32.mrb[0].mxu0
        %1158 = vdwg.mxu0
        %1159 = vrot.lane.b32.xlu0 %v777, 56
        %v1160 = vpop.permute.xlu0 %1159
        %1161 = vrot.lane.b32.xlu0 %v779, 120
        %v1162 = vpop.permute.xlu0 %1161
        %v1164 = vsel %vm780, %v1160, 0
        %v1167 = vsel %vm780, %v1162, 0
        %1169 = vmatprep.subr.bf16.mxu0 0
        %1170 = vmatpush1.bf16.xpose.msra.mxu0 %v1167
        %1171 = vmatprep.subr.bf16.mxu0 0
        %1172 = vmatpush1.bf16.xpose.msra.mxu0 0
        %1173 = vmatprep.subr.bf16.mxu0 0
        %1174 = vmatpush1.bf16.xpose.msra.mxu0 0
        %1175 = vmatprep.subr.bf16.mxu0 0
        %1176 = vmatpush1.bf16.xpose.msra.mxu0 0
        %1177 = vmatprep.subr.bf16.mxu0 0
        %1178 = vmatpush1.bf16.xpose.msra.mxu0 0
        %1179 = vmatprep.subr.bf16.mxu0 0
        %1180 = vmatpush1.bf16.xpose.msra.mxu0 0
        %1181 = vmatprep.subr.bf16.mxu0 0
        %1182 = vmatpush1.bf16.xpose.msra.mxu0 0
        %1183 = vmatprep.subr.bf16.mxu0 0
        %1184 = vmatpush1.bf16.xpose.msra.mxu0 0
        %1185 = vmatprep.subr.bf16.mxu0 0
        %1186 = vmatpush1.bf16.xpose.msra.mxu0 0
        %1187 = vmatprep.subr.bf16.mxu0 0
        %1188 = vmatpush1.bf16.xpose.msra.mxu0 0
        %1189 = vmatprep.subr.bf16.mxu0 0
        %1190 = vmatpush1.bf16.xpose.msra.mxu0 0
        %1191 = vmatprep.subr.bf16.mxu0 0
        %1192 = vmatpush1.bf16.xpose.msra.mxu0 0
        %1193 = vmatprep.subr.bf16.mxu0 0
        %1194 = vmatpush1.bf16.xpose.msra.mxu0 0
        %1195 = vmatprep.subr.bf16.mxu0 0
        %1196 = vmatpush1.bf16.xpose.msra.mxu0 0
        %1197 = vmatprep.subr.bf16.mxu0 0
        %1198 = vmatpush1.bf16.xpose.msra.mxu0 0
        %1199 = vmatprep.subr.bf16.mxu0 0
        %1200 = vmatpush1.bf16.xpose.msra.mxu0 0
        %1201 = vmatprep.mubr.bf16.mxu0 0
        %1202 = vmatmul.mubr.bf16.gmra.mrb[0].mxu0 %v1164
        %v1203 = vpop.f32.mrb[0].mxu0
        %v1204 = vadd.f32 0.0, %v1203
        %v1205 = vpop.f32.mrb[0].mxu0
        %v1206 = vpop.f32.mrb[0].mxu0
        %v1207 = vpop.f32.mrb[0].mxu0
        %1208 = vdwg.mxu0
        %v1209 = vsel %vm927, %v1104, %v1154
        %v1210 = vsel %vm780, %v1209, -inf
        %1211 = vmax.xlane.f32.xlu0 %v1210
        %v1212 = vpop.xlane.xlu0 %1211
        %v1213 = vsel %vm780, %v1204, -inf
        %1214 = vmax.xlane.f32.xlu0 %v1213
        %v1215 = vpop.xlane.xlu0 %1214
        %v1216 = vmax.f32 %v1212, %v1215
        %v1217 = vsub.f32 %v1209, %v1216
        %v1218 = vmul.f32 %v1217, 1.442695
        %v1219 = vpow.pop %v1218
        %v1220 = vsub.f32 %v1204, %v1216
        %v1221 = vmul.f32 %v1220, 1.442695
        %v1222 = vpow.pop %v1221
        %v1223 = vsel %vm780, %v1219, 0.0
        %1224 = vadd.xlane.f32.xlu0 %v1223
        %v1225 = vpop.xlane.xlu0 %1224
        %v1226 = vsel %vm780, %v1222, 0.0
        %1227 = vadd.xlane.f32.xlu0 %v1226
        %v1228 = vpop.xlane.xlu0 %1227
        %v1229 = vadd.f32 %v1225, %v1228
        %v1230 = vrcp.pop %v1229
        %1232 = vrot.lane.b32.xlu0 %v1222, 8
        %v1233 = vpop.permute.xlu0 %1232
        %v1235 = vsel %vm780, %v1219, %v1233
        %v1236 = vmul.f32 %v1235, %v1230
        %s1237 = scalar_lea.vmem %s590, 8 [#allocation15]
        %1238 = vst.msk [vmem:[%s1237] sm:$0xff] %vm956, %v1236
        %v1239 = vpack.c.bf16 %v1219, %v1219
        %v1240 = vpack.c.bf16 %v1222, %v1222
        %1241 = vrot.lane.b32.xlu0 %v779, 88
        %v1242 = vpop.permute.xlu0 %1241
        %v1244 = vsel %vm780, %v1240, 0
        %v1247 = vsel %vm966, %v1242, 0
        %1249 = vmatprep.subr.bf16.mxu0 0
        %1250 = vmatpush1.bf16.msra.mxu0 %v1247
        %1251 = vmatprep.subr.bf16.mxu0 0
        %1252 = vmatpush1.bf16.msra.mxu0 0
        %1253 = vmatprep.subr.bf16.mxu0 0
        %1254 = vmatpush1.bf16.msra.mxu0 0
        %1255 = vmatprep.subr.bf16.mxu0 0
        %1256 = vmatpush1.bf16.msra.mxu0 0
        %1257 = vmatprep.subr.bf16.mxu0 0
        %1258 = vmatpush1.bf16.msra.mxu0 0
        %1259 = vmatprep.subr.bf16.mxu0 0
        %1260 = vmatpush1.bf16.msra.mxu0 0
        %1261 = vmatprep.subr.bf16.mxu0 0
        %1262 = vmatpush1.bf16.msra.mxu0 0
        %1263 = vmatprep.subr.bf16.mxu0 0
        %1264 = vmatpush1.bf16.msra.mxu0 0
        %1265 = vmatprep.subr.bf16.mxu0 0
        %1266 = vmatpush1.bf16.msra.mxu0 0
        %1267 = vmatprep.subr.bf16.mxu0 0
        %1268 = vmatpush1.bf16.msra.mxu0 0
        %1269 = vmatprep.subr.bf16.mxu0 0
        %1270 = vmatpush1.bf16.msra.mxu0 0
        %1271 = vmatprep.subr.bf16.mxu0 0
        %1272 = vmatpush1.bf16.msra.mxu0 0
        %1273 = vmatprep.subr.bf16.mxu0 0
        %1274 = vmatpush1.bf16.msra.mxu0 0
        %1275 = vmatprep.subr.bf16.mxu0 0
        %1276 = vmatpush1.bf16.msra.mxu0 0
        %1277 = vmatprep.subr.bf16.mxu0 0
        %1278 = vmatpush1.bf16.msra.mxu0 0
        %1279 = vmatprep.subr.bf16.mxu0 0
        %1280 = vmatpush1.bf16.msra.mxu0 0
        %1281 = vmatprep.mubr.bf16.mxu0 0
        %1282 = vmatmul.mubr.bf16.gmra.mrb[0].mxu0 %v1244
        %v1283 = vpop.f32.mrb[0].mxu0
        %v1284 = vadd.f32 0.0, %v1283
        %v1285 = vpop.f32.mrb[0].mxu0
        %v1286 = vpop.f32.mrb[0].mxu0
        %v1287 = vpop.f32.mrb[0].mxu0
        %1288 = vdwg.mxu0
        %1289 = vrot.lane.b32.xlu0 %v778, 56
        %v1290 = vpop.permute.xlu0 %1289
        %v1292 = vsel %vm780, %v1239, 0
        %v1295 = vsel %vm966, %v1290, 0
        %1297 = vmatprep.subr.bf16.mxu0 0
        %1298 = vmatpush1.bf16.msra.mxu0 %v1295
        %1299 = vmatprep.subr.bf16.mxu0 0
        %1300 = vmatpush1.bf16.msra.mxu0 0
        %1301 = vmatprep.subr.bf16.mxu0 0
        %1302 = vmatpush1.bf16.msra.mxu0 0
        %1303 = vmatprep.subr.bf16.mxu0 0
        %1304 = vmatpush1.bf16.msra.mxu0 0
        %1305 = vmatprep.subr.bf16.mxu0 0
        %1306 = vmatpush1.bf16.msra.mxu0 0
        %1307 = vmatprep.subr.bf16.mxu0 0
        %1308 = vmatpush1.bf16.msra.mxu0 0
        %1309 = vmatprep.subr.bf16.mxu0 0
        %1310 = vmatpush1.bf16.msra.mxu0 0
        %1311 = vmatprep.subr.bf16.mxu0 0
        %1312 = vmatpush1.bf16.msra.mxu0 0
        %1313 = vmatprep.subr.bf16.mxu0 0
        %1314 = vmatpush1.bf16.msra.mxu0 0
        %1315 = vmatprep.subr.bf16.mxu0 0
        %1316 = vmatpush1.bf16.msra.mxu0 0
        %1317 = vmatprep.subr.bf16.mxu0 0
        %1318 = vmatpush1.bf16.msra.mxu0 0
        %1319 = vmatprep.subr.bf16.mxu0 0
        %1320 = vmatpush1.bf16.msra.mxu0 0
        %1321 = vmatprep.subr.bf16.mxu0 0
        %1322 = vmatpush1.bf16.msra.mxu0 0
        %1323 = vmatprep.subr.bf16.mxu0 0
        %1324 = vmatpush1.bf16.msra.mxu0 0
        %1325 = vmatprep.subr.bf16.mxu0 0
        %1326 = vmatpush1.bf16.msra.mxu0 0
        %1327 = vmatprep.subr.bf16.mxu0 0
        %1328 = vmatpush1.bf16.msra.mxu0 0
        %1329 = vmatprep.mubr.bf16.mxu0 0
        %1330 = vmatmul.mubr.bf16.gmra.mrb[0].mxu0 %v1292
        %v1331 = vpop.f32.mrb[0].mxu0
        %v1332 = vadd.f32 %v1284, %v1331
        %v1333 = vpop.f32.mrb[0].mxu0
        %v1334 = vpop.f32.mrb[0].mxu0
        %v1335 = vpop.f32.mrb[0].mxu0
        %1336 = vdwg.mxu0
        %v1337 = vmul.f32 %v1332, %v1230
        %1338 = vrot.lane.b32.xlu0 %v777, 112
        %v1339 = vpop.permute.xlu0 %1338
        %1340 = vrot.lane.b32.xlu0 %v778, 112
        %v1341 = vpop.permute.xlu0 %1340
        %v1343 = vsel %vm780, %v1339, 0
        %v1346 = vsel %vm780, %v1341, 0
        %1348 = vmatprep.subr.bf16.mxu0 0
        %1349 = vmatpush1.bf16.xpose.msra.mxu0 %v1346
        %1350 = vmatprep.subr.bf16.mxu0 0
        %1351 = vmatpush1.bf16.xpose.msra.mxu0 0
        %1352 = vmatprep.subr.bf16.mxu0 0
        %1353 = vmatpush1.bf16.xpose.msra.mxu0 0
        %1354 = vmatprep.subr.bf16.mxu0 0
        %1355 = vmatpush1.bf16.xpose.msra.mxu0 0
        %1356 = vmatprep.subr.bf16.mxu0 0
        %1357 = vmatpush1.bf16.xpose.msra.mxu0 0
        %1358 = vmatprep.subr.bf16.mxu0 0
        %1359 = vmatpush1.bf16.xpose.msra.mxu0 0
        %1360 = vmatprep.subr.bf16.mxu0 0
        %1361 = vmatpush1.bf16.xpose.msra.mxu0 0
        %1362 = vmatprep.subr.bf16.mxu0 0
        %1363 = vmatpush1.bf16.xpose.msra.mxu0 0
        %1364 = vmatprep.subr.bf16.mxu0 0
        %1365 = vmatpush1.bf16.xpose.msra.mxu0 0
        %1366 = vmatprep.subr.bf16.mxu0 0
        %1367 = vmatpush1.bf16.xpose.msra.mxu0 0
        %1368 = vmatprep.subr.bf16.mxu0 0
        %1369 = vmatpush1.bf16.xpose.msra.mxu0 0
        %1370 = vmatprep.subr.bf16.mxu0 0
        %1371 = vmatpush1.bf16.xpose.msra.mxu0 0
        %1372 = vmatprep.subr.bf16.mxu0 0
        %1373 = vmatpush1.bf16.xpose.msra.mxu0 0
        %1374 = vmatprep.subr.bf16.mxu0 0
        %1375 = vmatpush1.bf16.xpose.msra.mxu0 0
        %1376 = vmatprep.subr.bf16.mxu0 0
        %1377 = vmatpush1.bf16.xpose.msra.mxu0 0
        %1378 = vmatprep.subr.bf16.mxu0 0
        %1379 = vmatpush1.bf16.xpose.msra.mxu0 0
        %1380 = vmatprep.mubr.bf16.mxu0 0
        %1381 = vmatmul.mubr.bf16.gmra.mrb[0].mxu0 %v1343
        %v1382 = vpop.f32.mrb[0].mxu0
        %v1383 = vadd.f32 0.0, %v1382
        %v1384 = vpop.f32.mrb[0].mxu0
        %v1385 = vpop.f32.mrb[0].mxu0
        %v1386 = vpop.f32.mrb[0].mxu0
        %1387 = vdwg.mxu0
        %1388 = vrot.lane.b32.xlu0 %v777, 80
        %v1389 = vpop.permute.xlu0 %1388
        %1390 = vrot.lane.b32.xlu0 %v778, 80
        %v1391 = vpop.permute.xlu0 %1390
        %v1393 = vsel %vm780, %v1389, 0
        %v1396 = vsel %vm780, %v1391, 0
        %1398 = vmatprep.subr.bf16.mxu0 0
        %1399 = vmatpush1.bf16.xpose.msra.mxu0 %v1396
        %1400 = vmatprep.subr.bf16.mxu0 0
        %1401 = vmatpush1.bf16.xpose.msra.mxu0 0
        %1402 = vmatprep.subr.bf16.mxu0 0
        %1403 = vmatpush1.bf16.xpose.msra.mxu0 0
        %1404 = vmatprep.subr.bf16.mxu0 0
        %1405 = vmatpush1.bf16.xpose.msra.mxu0 0
        %1406 = vmatprep.subr.bf16.mxu0 0
        %1407 = vmatpush1.bf16.xpose.msra.mxu0 0
        %1408 = vmatprep.subr.bf16.mxu0 0
        %1409 = vmatpush1.bf16.xpose.msra.mxu0 0
        %1410 = vmatprep.subr.bf16.mxu0 0
        %1411 = vmatpush1.bf16.xpose.msra.mxu0 0
        %1412 = vmatprep.subr.bf16.mxu0 0
        %1413 = vmatpush1.bf16.xpose.msra.mxu0 0
        %1414 = vmatprep.subr.bf16.mxu0 0
        %1415 = vmatpush1.bf16.xpose.msra.mxu0 0
        %1416 = vmatprep.subr.bf16.mxu0 0
        %1417 = vmatpush1.bf16.xpose.msra.mxu0 0
        %1418 = vmatprep.subr.bf16.mxu0 0
        %1419 = vmatpush1.bf16.xpose.msra.mxu0 0
        %1420 = vmatprep.subr.bf16.mxu0 0
        %1421 = vmatpush1.bf16.xpose.msra.mxu0 0
        %1422 = vmatprep.subr.bf16.mxu0 0
        %1423 = vmatpush1.bf16.xpose.msra.mxu0 0
        %1424 = vmatprep.subr.bf16.mxu0 0
        %1425 = vmatpush1.bf16.xpose.msra.mxu0 0
        %1426 = vmatprep.subr.bf16.mxu0 0
        %1427 = vmatpush1.bf16.xpose.msra.mxu0 0
        %1428 = vmatprep.subr.bf16.mxu0 0
        %1429 = vmatpush1.bf16.xpose.msra.mxu0 0
        %1430 = vmatprep.mubr.bf16.mxu0 0
        %1431 = vmatmul.mubr.bf16.gmra.mrb[0].mxu0 %v1393
        %v1432 = vpop.f32.mrb[0].mxu0
        %v1433 = vadd.f32 0.0, %v1432
        %v1434 = vpop.f32.mrb[0].mxu0
        %v1435 = vpop.f32.mrb[0].mxu0
        %v1436 = vpop.f32.mrb[0].mxu0
        %1437 = vdwg.mxu0
        %1438 = vrot.lane.b32.xlu0 %v777, 48
        %v1439 = vpop.permute.xlu0 %1438
        %1440 = vrot.lane.b32.xlu0 %v779, 112
        %v1441 = vpop.permute.xlu0 %1440
        %v1443 = vsel %vm780, %v1439, 0
        %v1446 = vsel %vm780, %v1441, 0
        %1448 = vmatprep.subr.bf16.mxu0 0
        %1449 = vmatpush1.bf16.xpose.msra.mxu0 %v1446
        %1450 = vmatprep.subr.bf16.mxu0 0
        %1451 = vmatpush1.bf16.xpose.msra.mxu0 0
        %1452 = vmatprep.subr.bf16.mxu0 0
        %1453 = vmatpush1.bf16.xpose.msra.mxu0 0
        %1454 = vmatprep.subr.bf16.mxu0 0
        %1455 = vmatpush1.bf16.xpose.msra.mxu0 0
        %1456 = vmatprep.subr.bf16.mxu0 0
        %1457 = vmatpush1.bf16.xpose.msra.mxu0 0
        %1458 = vmatprep.subr.bf16.mxu0 0
        %1459 = vmatpush1.bf16.xpose.msra.mxu0 0
        %1460 = vmatprep.subr.bf16.mxu0 0
        %1461 = vmatpush1.bf16.xpose.msra.mxu0 0
        %1462 = vmatprep.subr.bf16.mxu0 0
        %1463 = vmatpush1.bf16.xpose.msra.mxu0 0
        %1464 = vmatprep.subr.bf16.mxu0 0
        %1465 = vmatpush1.bf16.xpose.msra.mxu0 0
        %1466 = vmatprep.subr.bf16.mxu0 0
        %1467 = vmatpush1.bf16.xpose.msra.mxu0 0
        %1468 = vmatprep.subr.bf16.mxu0 0
        %1469 = vmatpush1.bf16.xpose.msra.mxu0 0
        %1470 = vmatprep.subr.bf16.mxu0 0
        %1471 = vmatpush1.bf16.xpose.msra.mxu0 0
        %1472 = vmatprep.subr.bf16.mxu0 0
        %1473 = vmatpush1.bf16.xpose.msra.mxu0 0
        %1474 = vmatprep.subr.bf16.mxu0 0
        %1475 = vmatpush1.bf16.xpose.msra.mxu0 0
        %1476 = vmatprep.subr.bf16.mxu0 0
        %1477 = vmatpush1.bf16.xpose.msra.mxu0 0
        %1478 = vmatprep.subr.bf16.mxu0 0
        %1479 = vmatpush1.bf16.xpose.msra.mxu0 0
        %1480 = vmatprep.mubr.bf16.mxu0 0
        %1481 = vmatmul.mubr.bf16.gmra.mrb[0].mxu0 %v1443
        %v1482 = vpop.f32.mrb[0].mxu0
        %v1483 = vadd.f32 0.0, %v1482
        %v1484 = vpop.f32.mrb[0].mxu0
        %v1485 = vpop.f32.mrb[0].mxu0
        %v1486 = vpop.f32.mrb[0].mxu0
        %1487 = vdwg.mxu0
        %v1488 = vsel %vm927, %v1383, %v1433
        %v1489 = vsel %vm780, %v1488, -inf
        %1490 = vmax.xlane.f32.xlu0 %v1489
        %v1491 = vpop.xlane.xlu0 %1490
        %v1492 = vsel %vm780, %v1483, -inf
        %1493 = vmax.xlane.f32.xlu0 %v1492
        %v1494 = vpop.xlane.xlu0 %1493
        %v1495 = vmax.f32 %v1491, %v1494
        %v1496 = vsub.f32 %v1488, %v1495
        %v1497 = vmul.f32 %v1496, 1.442695
        %v1498 = vpow.pop %v1497
        %v1499 = vsub.f32 %v1483, %v1495
        %v1500 = vmul.f32 %v1499, 1.442695
        %v1501 = vpow.pop %v1500
        %v1502 = vsel %vm780, %v1498, 0.0
        %1503 = vadd.xlane.f32.xlu0 %v1502
        %v1504 = vpop.xlane.xlu0 %1503
        %v1505 = vsel %vm780, %v1501, 0.0
        %1506 = vadd.xlane.f32.xlu0 %v1505
        %v1507 = vpop.xlane.xlu0 %1506
        %v1508 = vadd.f32 %v1504, %v1507
        %v1509 = vrcp.pop %v1508
        %1511 = vrot.lane.b32.xlu0 %v1501, 8
        %v1512 = vpop.permute.xlu0 %1511
        %v1514 = vsel %vm780, %v1498, %v1512
        %v1515 = vmul.f32 %v1514, %v1509
        %s1516 = scalar_lea.vmem %s590, 16 [#allocation15]
        %1517 = vst.msk [vmem:[%s1516] sm:$0xff] %vm956, %v1515
        %v1518 = vpack.c.bf16 %v1498, %v1498
        %v1519 = vpack.c.bf16 %v1501, %v1501
        %1520 = vrot.lane.b32.xlu0 %v779, 80
        %v1521 = vpop.permute.xlu0 %1520
        %v1523 = vsel %vm780, %v1519, 0
        %v1526 = vsel %vm966, %v1521, 0
        %1528 = vmatprep.subr.bf16.mxu0 0
        %1529 = vmatpush1.bf16.msra.mxu0 %v1526
        %1530 = vmatprep.subr.bf16.mxu0 0
        %1531 = vmatpush1.bf16.msra.mxu0 0
        %1532 = vmatprep.subr.bf16.mxu0 0
        %1533 = vmatpush1.bf16.msra.mxu0 0
        %1534 = vmatprep.subr.bf16.mxu0 0
        %1535 = vmatpush1.bf16.msra.mxu0 0
        %1536 = vmatprep.subr.bf16.mxu0 0
        %1537 = vmatpush1.bf16.msra.mxu0 0
        %1538 = vmatprep.subr.bf16.mxu0 0
        %1539 = vmatpush1.bf16.msra.mxu0 0
        %1540 = vmatprep.subr.bf16.mxu0 0
        %1541 = vmatpush1.bf16.msra.mxu0 0
        %1542 = vmatprep.subr.bf16.mxu0 0
        %1543 = vmatpush1.bf16.msra.mxu0 0
        %1544 = vmatprep.subr.bf16.mxu0 0
        %1545 = vmatpush1.bf16.msra.mxu0 0
        %1546 = vmatprep.subr.bf16.mxu0 0
        %1547 = vmatpush1.bf16.msra.mxu0 0
        %1548 = vmatprep.subr.bf16.mxu0 0
        %1549 = vmatpush1.bf16.msra.mxu0 0
        %1550 = vmatprep.subr.bf16.mxu0 0
        %1551 = vmatpush1.bf16.msra.mxu0 0
        %1552 = vmatprep.subr.bf16.mxu0 0
        %1553 = vmatpush1.bf16.msra.mxu0 0
        %1554 = vmatprep.subr.bf16.mxu0 0
        %1555 = vmatpush1.bf16.msra.mxu0 0
        %1556 = vmatprep.subr.bf16.mxu0 0
        %1557 = vmatpush1.bf16.msra.mxu0 0
        %1558 = vmatprep.subr.bf16.mxu0 0
        %1559 = vmatpush1.bf16.msra.mxu0 0
        %1560 = vmatprep.mubr.bf16.mxu0 0
        %1561 = vmatmul.mubr.bf16.gmra.mrb[0].mxu0 %v1523
        %v1562 = vpop.f32.mrb[0].mxu0
        %v1563 = vadd.f32 0.0, %v1562
        %v1564 = vpop.f32.mrb[0].mxu0
        %v1565 = vpop.f32.mrb[0].mxu0
        %v1566 = vpop.f32.mrb[0].mxu0
        %1567 = vdwg.mxu0
        %1568 = vrot.lane.b32.xlu0 %v778, 48
        %v1569 = vpop.permute.xlu0 %1568
        %v1571 = vsel %vm780, %v1518, 0
        %v1574 = vsel %vm966, %v1569, 0
        %1576 = vmatprep.subr.bf16.mxu0 0
        %1577 = vmatpush1.bf16.msra.mxu0 %v1574
        %1578 = vmatprep.subr.bf16.mxu0 0
        %1579 = vmatpush1.bf16.msra.mxu0 0
        %1580 = vmatprep.subr.bf16.mxu0 0
        %1581 = vmatpush1.bf16.msra.mxu0 0
        %1582 = vmatprep.subr.bf16.mxu0 0
        %1583 = vmatpush1.bf16.msra.mxu0 0
        %1584 = vmatprep.subr.bf16.mxu0 0
        %1585 = vmatpush1.bf16.msra.mxu0 0
        %1586 = vmatprep.subr.bf16.mxu0 0
        %1587 = vmatpush1.bf16.msra.mxu0 0
        %1588 = vmatprep.subr.bf16.mxu0 0
        %1589 = vmatpush1.bf16.msra.mxu0 0
        %1590 = vmatprep.subr.bf16.mxu0 0
        %1591 = vmatpush1.bf16.msra.mxu0 0
        %1592 = vmatprep.subr.bf16.mxu0 0
        %1593 = vmatpush1.bf16.msra.mxu0 0
        %1594 = vmatprep.subr.bf16.mxu0 0
        %1595 = vmatpush1.bf16.msra.mxu0 0
        %1596 = vmatprep.subr.bf16.mxu0 0
        %1597 = vmatpush1.bf16.msra.mxu0 0
        %1598 = vmatprep.subr.bf16.mxu0 0
        %1599 = vmatpush1.bf16.msra.mxu0 0
        %1600 = vmatprep.subr.bf16.mxu0 0
        %1601 = vmatpush1.bf16.msra.mxu0 0
        %1602 = vmatprep.subr.bf16.mxu0 0
        %1603 = vmatpush1.bf16.msra.mxu0 0
        %1604 = vmatprep.subr.bf16.mxu0 0
        %1605 = vmatpush1.bf16.msra.mxu0 0
        %1606 = vmatprep.subr.bf16.mxu0 0
        %1607 = vmatpush1.bf16.msra.mxu0 0
        %1608 = vmatprep.mubr.bf16.mxu0 0
        %1609 = vmatmul.mubr.bf16.gmra.mrb[0].mxu0 %v1571
        %v1610 = vpop.f32.mrb[0].mxu0
        %v1611 = vadd.f32 %v1563, %v1610
        %v1612 = vpop.f32.mrb[0].mxu0
        %v1613 = vpop.f32.mrb[0].mxu0
        %v1614 = vpop.f32.mrb[0].mxu0
        %1615 = vdwg.mxu0
        %v1616 = vmul.f32 %v1611, %v1509
        %1617 = vrot.lane.b32.xlu0 %v777, 104
        %v1618 = vpop.permute.xlu0 %1617
        %1619 = vrot.lane.b32.xlu0 %v778, 104
        %v1620 = vpop.permute.xlu0 %1619
        %v1622 = vsel %vm780, %v1618, 0
        %v1625 = vsel %vm780, %v1620, 0
        %1627 = vmatprep.subr.bf16.mxu0 0
        %1628 = vmatpush1.bf16.xpose.msra.mxu0 %v1625
        %1629 = vmatprep.subr.bf16.mxu0 0
        %1630 = vmatpush1.bf16.xpose.msra.mxu0 0
        %1631 = vmatprep.subr.bf16.mxu0 0
        %1632 = vmatpush1.bf16.xpose.msra.mxu0 0
        %1633 = vmatprep.subr.bf16.mxu0 0
        %1634 = vmatpush1.bf16.xpose.msra.mxu0 0
        %1635 = vmatprep.subr.bf16.mxu0 0
        %1636 = vmatpush1.bf16.xpose.msra.mxu0 0
        %1637 = vmatprep.subr.bf16.mxu0 0
        %1638 = vmatpush1.bf16.xpose.msra.mxu0 0
        %1639 = vmatprep.subr.bf16.mxu0 0
        %1640 = vmatpush1.bf16.xpose.msra.mxu0 0
        %1641 = vmatprep.subr.bf16.mxu0 0
        %1642 = vmatpush1.bf16.xpose.msra.mxu0 0
        %1643 = vmatprep.subr.bf16.mxu0 0
        %1644 = vmatpush1.bf16.xpose.msra.mxu0 0
        %1645 = vmatprep.subr.bf16.mxu0 0
        %1646 = vmatpush1.bf16.xpose.msra.mxu0 0
        %1647 = vmatprep.subr.bf16.mxu0 0
        %1648 = vmatpush1.bf16.xpose.msra.mxu0 0
        %1649 = vmatprep.subr.bf16.mxu0 0
        %1650 = vmatpush1.bf16.xpose.msra.mxu0 0
        %1651 = vmatprep.subr.bf16.mxu0 0
        %1652 = vmatpush1.bf16.xpose.msra.mxu0 0
        %1653 = vmatprep.subr.bf16.mxu0 0
        %1654 = vmatpush1.bf16.xpose.msra.mxu0 0
        %1655 = vmatprep.subr.bf16.mxu0 0
        %1656 = vmatpush1.bf16.xpose.msra.mxu0 0
        %1657 = vmatprep.subr.bf16.mxu0 0
        %1658 = vmatpush1.bf16.xpose.msra.mxu0 0
        %1659 = vmatprep.mubr.bf16.mxu0 0
        %1660 = vmatmul.mubr.bf16.gmra.mrb[0].mxu0 %v1622
        %v1661 = vpop.f32.mrb[0].mxu0
        %v1662 = vadd.f32 0.0, %v1661
        %v1663 = vpop.f32.mrb[0].mxu0
        %v1664 = vpop.f32.mrb[0].mxu0
        %v1665 = vpop.f32.mrb[0].mxu0
        %1666 = vdwg.mxu0
        %1667 = vrot.lane.b32.xlu0 %v777, 72
        %v1668 = vpop.permute.xlu0 %1667
        %1669 = vrot.lane.b32.xlu0 %v778, 72
        %v1670 = vpop.permute.xlu0 %1669
        %v1672 = vsel %vm780, %v1668, 0
        %v1675 = vsel %vm780, %v1670, 0
        %1677 = vmatprep.subr.bf16.mxu0 0
        %1678 = vmatpush1.bf16.xpose.msra.mxu0 %v1675
        %1679 = vmatprep.subr.bf16.mxu0 0
        %1680 = vmatpush1.bf16.xpose.msra.mxu0 0
        %1681 = vmatprep.subr.bf16.mxu0 0
        %1682 = vmatpush1.bf16.xpose.msra.mxu0 0
        %1683 = vmatprep.subr.bf16.mxu0 0
        %1684 = vmatpush1.bf16.xpose.msra.mxu0 0
        %1685 = vmatprep.subr.bf16.mxu0 0
        %1686 = vmatpush1.bf16.xpose.msra.mxu0 0
        %1687 = vmatprep.subr.bf16.mxu0 0
        %1688 = vmatpush1.bf16.xpose.msra.mxu0 0
        %1689 = vmatprep.subr.bf16.mxu0 0
        %1690 = vmatpush1.bf16.xpose.msra.mxu0 0
        %1691 = vmatprep.subr.bf16.mxu0 0
        %1692 = vmatpush1.bf16.xpose.msra.mxu0 0
        %1693 = vmatprep.subr.bf16.mxu0 0
        %1694 = vmatpush1.bf16.xpose.msra.mxu0 0
        %1695 = vmatprep.subr.bf16.mxu0 0
        %1696 = vmatpush1.bf16.xpose.msra.mxu0 0
        %1697 = vmatprep.subr.bf16.mxu0 0
        %1698 = vmatpush1.bf16.xpose.msra.mxu0 0
        %1699 = vmatprep.subr.bf16.mxu0 0
        %1700 = vmatpush1.bf16.xpose.msra.mxu0 0
        %1701 = vmatprep.subr.bf16.mxu0 0
        %1702 = vmatpush1.bf16.xpose.msra.mxu0 0
        %1703 = vmatprep.subr.bf16.mxu0 0
        %1704 = vmatpush1.bf16.xpose.msra.mxu0 0
        %1705 = vmatprep.subr.bf16.mxu0 0
        %1706 = vmatpush1.bf16.xpose.msra.mxu0 0
        %1707 = vmatprep.subr.bf16.mxu0 0
        %1708 = vmatpush1.bf16.xpose.msra.mxu0 0
        %1709 = vmatprep.mubr.bf16.mxu0 0
        %1710 = vmatmul.mubr.bf16.gmra.mrb[0].mxu0 %v1672
        %v1711 = vpop.f32.mrb[0].mxu0
        %v1712 = vadd.f32 0.0, %v1711
        %v1713 = vpop.f32.mrb[0].mxu0
        %v1714 = vpop.f32.mrb[0].mxu0
        %v1715 = vpop.f32.mrb[0].mxu0
        %1716 = vdwg.mxu0
        %1717 = vrot.lane.b32.xlu0 %v777, 40
        %v1718 = vpop.permute.xlu0 %1717
        %1719 = vrot.lane.b32.xlu0 %v779, 104
        %v1720 = vpop.permute.xlu0 %1719
        %v1722 = vsel %vm780, %v1718, 0
        %v1725 = vsel %vm780, %v1720, 0
        %1727 = vmatprep.subr.bf16.mxu0 0
        %1728 = vmatpush1.bf16.xpose.msra.mxu0 %v1725
        %1729 = vmatprep.subr.bf16.mxu0 0
        %1730 = vmatpush1.bf16.xpose.msra.mxu0 0
        %1731 = vmatprep.subr.bf16.mxu0 0
        %1732 = vmatpush1.bf16.xpose.msra.mxu0 0
        %1733 = vmatprep.subr.bf16.mxu0 0
        %1734 = vmatpush1.bf16.xpose.msra.mxu0 0
        %1735 = vmatprep.subr.bf16.mxu0 0
        %1736 = vmatpush1.bf16.xpose.msra.mxu0 0
        %1737 = vmatprep.subr.bf16.mxu0 0
        %1738 = vmatpush1.bf16.xpose.msra.mxu0 0
        %1739 = vmatprep.subr.bf16.mxu0 0
        %1740 = vmatpush1.bf16.xpose.msra.mxu0 0
        %1741 = vmatprep.subr.bf16.mxu0 0
        %1742 = vmatpush1.bf16.xpose.msra.mxu0 0
        %1743 = vmatprep.subr.bf16.mxu0 0
        %1744 = vmatpush1.bf16.xpose.msra.mxu0 0
        %1745 = vmatprep.subr.bf16.mxu0 0
        %1746 = vmatpush1.bf16.xpose.msra.mxu0 0
        %1747 = vmatprep.subr.bf16.mxu0 0
        %1748 = vmatpush1.bf16.xpose.msra.mxu0 0
        %1749 = vmatprep.subr.bf16.mxu0 0
        %1750 = vmatpush1.bf16.xpose.msra.mxu0 0
        %1751 = vmatprep.subr.bf16.mxu0 0
        %1752 = vmatpush1.bf16.xpose.msra.mxu0 0
        %1753 = vmatprep.subr.bf16.mxu0 0
        %1754 = vmatpush1.bf16.xpose.msra.mxu0 0
        %1755 = vmatprep.subr.bf16.mxu0 0
        %1756 = vmatpush1.bf16.xpose.msra.mxu0 0
        %1757 = vmatprep.subr.bf16.mxu0 0
        %1758 = vmatpush1.bf16.xpose.msra.mxu0 0
        %1759 = vmatprep.mubr.bf16.mxu0 0
        %1760 = vmatmul.mubr.bf16.gmra.mrb[0].mxu0 %v1722
        %v1761 = vpop.f32.mrb[0].mxu0
        %v1762 = vadd.f32 0.0, %v1761
        %v1763 = vpop.f32.mrb[0].mxu0
        %v1764 = vpop.f32.mrb[0].mxu0
        %v1765 = vpop.f32.mrb[0].mxu0
        %1766 = vdwg.mxu0
        %v1767 = vsel %vm927, %v1662, %v1712
        %v1768 = vsel %vm780, %v1767, -inf
        %1769 = vmax.xlane.f32.xlu0 %v1768
        %v1770 = vpop.xlane.xlu0 %1769
        %v1771 = vsel %vm780, %v1762, -inf
        %1772 = vmax.xlane.f32.xlu0 %v1771
        %v1773 = vpop.xlane.xlu0 %1772
        %v1774 = vmax.f32 %v1770, %v1773
        %v1775 = vsub.f32 %v1767, %v1774
        %v1776 = vmul.f32 %v1775, 1.442695
        %v1777 = vpow.pop %v1776
        %v1778 = vsub.f32 %v1762, %v1774
        %v1779 = vmul.f32 %v1778, 1.442695
        %v1780 = vpow.pop %v1779
        %v1781 = vsel %vm780, %v1777, 0.0
        %1782 = vadd.xlane.f32.xlu0 %v1781
        %v1783 = vpop.xlane.xlu0 %1782
        %v1784 = vsel %vm780, %v1780, 0.0
        %1785 = vadd.xlane.f32.xlu0 %v1784
        %v1786 = vpop.xlane.xlu0 %1785
        %v1787 = vadd.f32 %v1783, %v1786
        %v1788 = vrcp.pop %v1787
        %1790 = vrot.lane.b32.xlu0 %v1780, 8
        %v1791 = vpop.permute.xlu0 %1790
        %v1793 = vsel %vm780, %v1777, %v1791
        %v1794 = vmul.f32 %v1793, %v1788
        %s1795 = scalar_lea.vmem %s590, 24 [#allocation15]
        %1796 = vst.msk [vmem:[%s1795] sm:$0xff] %vm956, %v1794
        %v1797 = vpack.c.bf16 %v1777, %v1777
        %v1798 = vpack.c.bf16 %v1780, %v1780
        %1799 = vrot.lane.b32.xlu0 %v779, 72
        %v1800 = vpop.permute.xlu0 %1799
        %v1802 = vsel %vm780, %v1798, 0
        %v1805 = vsel %vm966, %v1800, 0
        %1807 = vmatprep.subr.bf16.mxu0 0
        %1808 = vmatpush1.bf16.msra.mxu0 %v1805
        %1809 = vmatprep.subr.bf16.mxu0 0
        %1810 = vmatpush1.bf16.msra.mxu0 0
        %1811 = vmatprep.subr.bf16.mxu0 0
        %1812 = vmatpush1.bf16.msra.mxu0 0
        %1813 = vmatprep.subr.bf16.mxu0 0
        %1814 = vmatpush1.bf16.msra.mxu0 0
        %1815 = vmatprep.subr.bf16.mxu0 0
        %1816 = vmatpush1.bf16.msra.mxu0 0
        %1817 = vmatprep.subr.bf16.mxu0 0
        %1818 = vmatpush1.bf16.msra.mxu0 0
        %1819 = vmatprep.subr.bf16.mxu0 0
        %1820 = vmatpush1.bf16.msra.mxu0 0
        %1821 = vmatprep.subr.bf16.mxu0 0
        %1822 = vmatpush1.bf16.msra.mxu0 0
        %1823 = vmatprep.subr.bf16.mxu0 0
        %1824 = vmatpush1.bf16.msra.mxu0 0
        %1825 = vmatprep.subr.bf16.mxu0 0
        %1826 = vmatpush1.bf16.msra.mxu0 0
        %1827 = vmatprep.subr.bf16.mxu0 0
        %1828 = vmatpush1.bf16.msra.mxu0 0
        %1829 = vmatprep.subr.bf16.mxu0 0
        %1830 = vmatpush1.bf16.msra.mxu0 0
        %1831 = vmatprep.subr.bf16.mxu0 0
        %1832 = vmatpush1.bf16.msra.mxu0 0
        %1833 = vmatprep.subr.bf16.mxu0 0
        %1834 = vmatpush1.bf16.msra.mxu0 0
        %1835 = vmatprep.subr.bf16.mxu0 0
        %1836 = vmatpush1.bf16.msra.mxu0 0
        %1837 = vmatprep.subr.bf16.mxu0 0
        %1838 = vmatpush1.bf16.msra.mxu0 0
        %1839 = vmatprep.mubr.bf16.mxu0 0
        %1840 = vmatmul.mubr.bf16.gmra.mrb[0].mxu0 %v1802
        %v1841 = vpop.f32.mrb[0].mxu0
        %v1842 = vadd.f32 0.0, %v1841
        %v1843 = vpop.f32.mrb[0].mxu0
        %v1844 = vpop.f32.mrb[0].mxu0
        %v1845 = vpop.f32.mrb[0].mxu0
        %1846 = vdwg.mxu0
        %1847 = vrot.lane.b32.xlu0 %v778, 40
        %v1848 = vpop.permute.xlu0 %1847
        %v1850 = vsel %vm780, %v1797, 0
        %v1853 = vsel %vm966, %v1848, 0
        %1855 = vmatprep.subr.bf16.mxu0 0
        %1856 = vmatpush1.bf16.msra.mxu0 %v1853
        %1857 = vmatprep.subr.bf16.mxu0 0
        %1858 = vmatpush1.bf16.msra.mxu0 0
        %1859 = vmatprep.subr.bf16.mxu0 0
        %1860 = vmatpush1.bf16.msra.mxu0 0
        %1861 = vmatprep.subr.bf16.mxu0 0
        %1862 = vmatpush1.bf16.msra.mxu0 0
        %1863 = vmatprep.subr.bf16.mxu0 0
        %1864 = vmatpush1.bf16.msra.mxu0 0
        %1865 = vmatprep.subr.bf16.mxu0 0
        %1866 = vmatpush1.bf16.msra.mxu0 0
        %1867 = vmatprep.subr.bf16.mxu0 0
        %1868 = vmatpush1.bf16.msra.mxu0 0
        %1869 = vmatprep.subr.bf16.mxu0 0
        %1870 = vmatpush1.bf16.msra.mxu0 0
        %1871 = vmatprep.subr.bf16.mxu0 0
        %1872 = vmatpush1.bf16.msra.mxu0 0
        %1873 = vmatprep.subr.bf16.mxu0 0
        %1874 = vmatpush1.bf16.msra.mxu0 0
        %1875 = vmatprep.subr.bf16.mxu0 0
        %1876 = vmatpush1.bf16.msra.mxu0 0
        %1877 = vmatprep.subr.bf16.mxu0 0
        %1878 = vmatpush1.bf16.msra.mxu0 0
        %1879 = vmatprep.subr.bf16.mxu0 0
        %1880 = vmatpush1.bf16.msra.mxu0 0
        %1881 = vmatprep.subr.bf16.mxu0 0
        %1882 = vmatpush1.bf16.msra.mxu0 0
        %1883 = vmatprep.subr.bf16.mxu0 0
        %1884 = vmatpush1.bf16.msra.mxu0 0
        %1885 = vmatprep.subr.bf16.mxu0 0
        %1886 = vmatpush1.bf16.msra.mxu0 0
        %1887 = vmatprep.mubr.bf16.mxu0 0
        %1888 = vmatmul.mubr.bf16.gmra.mrb[0].mxu0 %v1850
        %v1889 = vpop.f32.mrb[0].mxu0
        %v1890 = vadd.f32 %v1842, %v1889
        %v1891 = vpop.f32.mrb[0].mxu0
        %v1892 = vpop.f32.mrb[0].mxu0
        %v1893 = vpop.f32.mrb[0].mxu0
        %1894 = vdwg.mxu0
        %v1895 = vmul.f32 %v1890, %v1788
        %1897 = vrot.lane.b32.xlu0 %v1337, 8
        %v1898 = vpop.permute.xlu0 %1897
        %1901 = vrot.lane.b32.xlu0 %v1616, 16
        %v1902 = vpop.permute.xlu0 %1901
        %1905 = vrot.lane.b32.xlu0 %v1895, 24
        %v1906 = vpop.permute.xlu0 %1905
        %v1908 = vsel %vm780, %v1058, %v1898
        %v1909 = vsel %vm956, %v1908, %v1902
        %vm1910 = vcmask 195584
        %v1911 = vsel %vm1910, %v1909, %v1906
        %v1912 = vpack.c.bf16 %v1911, %v1911
        %v1913 = vld [vmem:[#allocation13] sm:$0xf]
        %v1914 = vld [vmem:[#allocation13 + $0x4] sm:$0xf]
        %v1915 = vld [vmem:[#allocation13 + $0x8] sm:$0xf]
        %v1916 = vld [vmem:[#allocation13 + $0xc] sm:$0xf]
        %v1917 = vld [vmem:[%s8] sm:$0x1]
        %v1919 = vlaneseq
        %v1920 = vshrl.u32 %v1919, 7
        %v1921 = vsub.s32 0, %v1920
        %v1922 = vrot.slane %v1917, %v1921
        %v1928 = vunpack.c.l.b16 %v1913
        %v1929 = vunpack.c.l.b16 %v1914
        %v1930 = vunpack.c.l.b16 %v1915
        %v1931 = vunpack.c.l.b16 %v1916
        %v1932 = vpack.c.b16 %v1929, %v1928
        %v1933 = vpack.c.b16 %v1931, %v1930
        %v1937 = vsel %vm615, %v1912, 0
        %1939 = vmatprep.subr.bf16.mxu0 0
        %1940 = vmatpush1.bf16.msra.mxu0 %v1932
        %1941 = vmatprep.subr.bf16.mxu0 0
        %1942 = vmatpush1.bf16.msra.mxu0 %v1933
        %1943 = vmatprep.subr.bf16.mxu0 0
        %1944 = vmatpush1.bf16.msra.mxu0 0
        %1945 = vmatprep.subr.bf16.mxu0 0
        %1946 = vmatpush1.bf16.msra.mxu0 0
        %1947 = vmatprep.subr.bf16.mxu0 0
        %1948 = vmatpush1.bf16.msra.mxu0 0
        %1949 = vmatprep.subr.bf16.mxu0 0
        %1950 = vmatpush1.bf16.msra.mxu0 0
        %1951 = vmatprep.subr.bf16.mxu0 0
        %1952 = vmatpush1.bf16.msra.mxu0 0
        %1953 = vmatprep.subr.bf16.mxu0 0
        %1954 = vmatpush1.bf16.msra.mxu0 0
        %1955 = vmatprep.subr.bf16.mxu0 0
        %1956 = vmatpush1.bf16.msra.mxu0 0
        %1957 = vmatprep.subr.bf16.mxu0 0
        %1958 = vmatpush1.bf16.msra.mxu0 0
        %1959 = vmatprep.subr.bf16.mxu0 0
        %1960 = vmatpush1.bf16.msra.mxu0 0
        %1961 = vmatprep.subr.bf16.mxu0 0
        %1962 = vmatpush1.bf16.msra.mxu0 0
        %1963 = vmatprep.subr.bf16.mxu0 0
        %1964 = vmatpush1.bf16.msra.mxu0 0
        %1965 = vmatprep.subr.bf16.mxu0 0
        %1966 = vmatpush1.bf16.msra.mxu0 0
        %1967 = vmatprep.subr.bf16.mxu0 0
        %1968 = vmatpush1.bf16.msra.mxu0 0
        %1969 = vmatprep.subr.bf16.mxu0 0
        %1970 = vmatpush1.bf16.msra.mxu0 0
        %1971 = vmatprep.mubr.bf16.mxu0 0
        %1972 = vmatmul.mubr.bf16.gmra.mrb[0].mxu0 %v1937
        %v1973 = vpop.f32.mrb[0].mxu0
        %v1974 = vadd.f32 %v1922, %v1973
        %v1975 = vpop.f32.mrb[0].mxu0
        %v1976 = vpop.f32.mrb[0].mxu0
        %v1977 = vpop.f32.mrb[0].mxu0
        %1978 = vdwg.mxu0
        %v1979 = vadd.f32 %v1974, %v592
        %v1980 = vsel %vm615, %v1979, 0.0
        %1981 = vadd.xlane.f32.xlu0 %v1980
        %v1982 = vpop.xlane.xlu0 %1981
        %v1983 = vrcp.pop 32.0
        %v1984 = vmul.f32 %v1982, %v1983
        %v1985 = vsub.f32 %v1979, %v1984
        %v1986 = vmul.f32 %v1985, %v1985
        %v1987 = vsel %vm615, %v1986, 0.0
        %1988 = vadd.xlane.f32.xlu0 %v1987
        %v1989 = vpop.xlane.xlu0 %1988
        %v1990 = vmul.f32 %v1989, %v1983
        %v1991 = vadd.f32 %v1990, 1e-05
        %v1992 = vrsqrt.pop %v1991
        %v1993 = vmul.f32 %v1985, %v1992
        %v1994 = vld [vmem:[%s9] sm:$0x1]
        %v1996 = vlaneseq
        %v1997 = vshrl.u32 %v1996, 7
        %v1998 = vsub.s32 0, %v1997
        %v1999 = vrot.slane %v1994, %v1998
        %v2001 = vmul.f32 %v1993, %v1999
        %v2002 = vld [vmem:[%s10] sm:$0x1]
        %v2004 = vlaneseq
        %v2005 = vshrl.u32 %v2004, 7
        %v2006 = vsub.s32 0, %v2005
        %v2007 = vrot.slane %v2002, %v2006
        %v2009 = vadd.f32 %v2001, %v2007
        %2010 = vst.msk [vmem:[%s583] sm:$0xff] %vm615, %v2009
        %s2011 = sand.u32 %s299, 1
        %s2012 = scalar_lea.sflag [#allocation4], %s2011
        %s2013 = sand.u32 %s299, 1
        %s2014 = smul.addr %s2013, 8
        %s2015 = scalar_lea.vmem [#allocation14], %s2014
        %s2016 = sand.u32 %s325, 1
        %s2017 = scalar_lea.sflag [#allocation16], %s2016
        %s2018 = sand.u32 %s325, 1
        %s2019 = smul.addr %s2018, 32
        %s2020 = scalar_lea.vmem [#allocation15], %s2019
        // Predicated region
        $region93: #{tpu_custom_call.1} parent=63 // pred_check
          %p2021 = pneg %p309
        $region94: #{tpu_custom_call.1} parent=63 // pred_check_branch
          %2023 = sbr.rel (%p2021) target = $region96
        $region95: #{tpu_custom_call.1} parent=63 // pred_region
          %s2025 = ssub.s32 128, 128
          %2026 = vsyncadd %s2012, %s2025
          %s2027 = smul.addr %s40, 128
          %s2028 = scalar_lea.hbm %s11, %s2027
          %s2030 = sshll.u32 %s2015, 4
          %s2031 = int_to_ptr.vmem [resolvable:$true] %s2030
          %2033 = dma.vmem_to_hbm [thread:$0]  %s2031, 128, %s2028, %s2012
        $region96: #{tpu_custom_call.1} parent=63 // pred_fallthru
          _
        // Predicated region
        $region97: #{tpu_custom_call.1} parent=63 // pred_check
          %p2034 = pneg %p335
        $region98: #{tpu_custom_call.1} parent=63 // pred_check_branch
          %2036 = sbr.rel (%p2034) target = $region100
        $region99: #{tpu_custom_call.1} parent=63 // pred_region
          %s2038 = ssub.s32 512, 512
          %2039 = vsyncadd %s2017, %s2038
          %s2040 = smul.addr %s40, 4
          %s2041 = smul.addr %s2040, 128
          %s2042 = scalar_lea.hbm %s12, %s2041
          %s2043 = sshll.u32 %s2020, 4
          %s2044 = int_to_ptr.vmem [resolvable:$true] %s2043
          %2049 = dma.vmem_to_hbm [thread:$0]  %s2044, 512, %s2042, %s2017, 128, 128, 8
        $region100: #{tpu_custom_call.1} parent=63 // pred_fallthru
          _
      $region64: #{tpu_custom_call.1} parent=5 // pred_fallthru
        _
      %p2050 = scmp.le.s32.totalorder 2, %s35
      // Predicated region
      $region101: #{tpu_custom_call.1} parent=5 // pred_check
        %p2051 = pneg %p2050
      $region102: #{tpu_custom_call.1} parent=5 // pred_check_branch
        %2053 = sbr.rel (%p2051) target = $region104
      $region103: #{tpu_custom_call.1} parent=5 // pred_region
        %s2054 = ssub.s32 %s35, 2
        // Predicated region
        $region105: #{tpu_custom_call.1} parent=103 // pred_check
          %p2055 = pneg %p315
        $region106: #{tpu_custom_call.1} parent=103 // pred_check_branch
          %2057 = sbr.rel (%p2055) target = $region108
        $region107: #{tpu_custom_call.1} parent=103 // pred_region
          %s2058 = sand.u32 %s300, 1
          %s2059 = scalar_lea.sflag [#allocation4], %s2058
          %s2060 = sand.u32 %s300, 1
          %s2061 = smul.addr %s2060, 8
          %s2062 = scalar_lea.vmem [#allocation14], %s2061
          %2063 = dma.done %s2059, 128
        $region108: #{tpu_custom_call.1} parent=103 // pred_fallthru
          _
        // Predicated region
        $region109: #{tpu_custom_call.1} parent=103 // pred_check
          %p2064 = pneg %p341
        $region110: #{tpu_custom_call.1} parent=103 // pred_check_branch
          %2066 = sbr.rel (%p2064) target = $region112
        $region111: #{tpu_custom_call.1} parent=103 // pred_region
          %s2067 = sand.u32 %s326, 1
          %s2068 = scalar_lea.sflag [#allocation16], %s2067
          %s2069 = sand.u32 %s326, 1
          %s2070 = smul.addr %s2069, 32
          %s2071 = scalar_lea.vmem [#allocation15], %s2070
          %2072 = dma.done %s2068, 512
        $region112: #{tpu_custom_call.1} parent=103 // pred_fallthru
          _
      $region104: #{tpu_custom_call.1} parent=5 // pred_fallthru
        _
    $region6: #{tpu_custom_call.1} parent=1 // loop_footer
      %s39 = sadd.s32 1, %s35
    $region7: #{tpu_custom_call.1} parent=1 // loop_footer_branch
      %34 = sbr.rel target = $region3
    $region8: #{tpu_custom_call.1} parent=1 // loop_exit
      _
    %2073 = vsyncpa [#allocation3], 1
    %s2074 = scalar_lea.sflag [#allocation3], 1
    %2075 = vsyncpa %s2074, 1
    %2076 = vsyncpa [#allocation6], 1
    %s2077 = scalar_lea.sflag [#allocation6], 1
    %2078 = vsyncpa %s2077, 1
    %2079 = vsyncpa [#allocation9], 1
    %s2080 = scalar_lea.sflag [#allocation9], 1
    %2081 = vsyncpa %s2080, 1
    %2082 = vsyncpa [#allocation12], 1
    %2083 = vsyncpa [#allocation4], 1
    %s2084 = scalar_lea.sflag [#allocation4], 1
    %2085 = vsyncpa %s2084, 1
    %2086 = vsyncpa [#allocation16], 1
    %s2087 = scalar_lea.sflag [#allocation16], 1
    %2088 = vsyncpa %s2087, 1

</llo_original>
